<compile_context>
chip_gen: v7x
topology: tpu7x:2x2x1
jax: 0.10.0
libtpu: 0.0.40
codegen_flags: <defaults>
</compile_context>

<pallas_src>
import functools

import numpy as np
import jax
import jax.numpy as jnp
from jax.experimental import pallas as pl
from jax.experimental.pallas import tpu as pltpu


# ----------------------------- fused Pallas kernel ---------------------------

def fused_body_motion_kernel(xrows_ref, wrow_ref, bconv_ref, wfused_ref,
                             wmotor_ref, bfused_ref, whh_ref,
                             motor_ref, lens_ref, h0_ref, c0_ref,
                             out_ref, hn_ref, cn_ref, *, T, B, Hh, HO):
    """conv3x3/s2/p1 + ReLU  ->  fc-folded gate projection  ->  LSTM recurrence.

    xrows_ref : (2, (HO+1)*TB, C*(W+2)) bf16, row-phase-split padded frames;
                row index = u*TB + n (n = t*B + b time-major), lane = c*(W+2)+w.
    wrow_ref  : (3, C*(W+2), Wo*cout) bf16 "row-band" conv weights (one per tap row).
    wfused_ref: (HO, Wo*cout, 4H) bf16   (fc folded into LSTM input projection,
                gate columns permuted to (i, f, o, g)).
    """
    TB = T * B

    # ---- Stage 1: conv + ReLU as 3 row-band matmuls (contiguous, 16-aligned) ----
    x0 = xrows_ref[0]                              # phase p=0 rows (even padded rows)
    x1 = xrows_ref[1]                              # phase p=1 rows (odd padded rows)
    acc = jnp.dot(x0[0:HO * TB, :], wrow_ref[0],   # tap row i=0  (padded row 2a)
                  preferred_element_type=jnp.float32)
    acc = acc + jnp.dot(x1[0:HO * TB, :], wrow_ref[1],          # i=1 (row 2a+1)
                        preferred_element_type=jnp.float32)
    acc = acc + jnp.dot(x0[TB:(HO + 1) * TB, :], wrow_ref[2],   # i=2 (row 2a+2)
                        preferred_element_type=jnp.float32)
    conv = jnp.maximum(acc + bconv_ref[...], 0.0)  # (HO*TB, Wo*cout) f32, rows a*TB+n
    conv_bf = conv.astype(jnp.bfloat16)

    # ---- Stage 2: gate pre-activations (fc folded into LSTM input projection) ----
    gates = motor_ref[...] * wmotor_ref[...] + bfused_ref[...]  # (TB, 4H) f32
    for a in range(HO):                            # 16-row slabs: aligned, no relayout
        gates = gates + jnp.dot(conv_bf[a * TB:(a + 1) * TB, :], wfused_ref[a],
                                preferred_element_type=jnp.float32)

    # ---- Stage 3: LSTM recurrence, fully unrolled (T small, tiny state) --------
    h = h0_ref[...]                                # (B, H) f32
    c = c0_ref[...]
    lens = lens_ref[...]                           # (B, 1) int32
    whh = whh_ref[...]                             # (H, 4H) f32
    outs = []
    for t in range(T):
        g = gates[t * B:(t + 1) * B, :] + jnp.dot(
            h, whh, preferred_element_type=jnp.float32)          # (B, 4H)
        sig = jax.nn.sigmoid(g)                    # full-vreg EUP sweeps
        tng = jnp.tanh(g)
        i_g = sig[:, 0 * Hh:1 * Hh]                # gate order (i, f, o, g)
        f_g = sig[:, 1 * Hh:2 * Hh]
        o_g = sig[:, 2 * Hh:3 * Hh]
        g_g = tng[:, 3 * Hh:4 * Hh]

        c_new = f_g * c + i_g * g_g
        h_new = o_g * jnp.tanh(c_new)

        mask = (t < lens).astype(jnp.float32)      # (B, 1): pack/pad_packed semantics
        h = mask * h_new + (1.0 - mask) * h
        c = mask * c_new + (1.0 - mask) * c
        outs.append(mask * h_new)                  # zeros past each sequence end

    out_ref[...] = jnp.concatenate(outs, axis=1)   # lane-dense (B, T*H), single store
    hn_ref[...] = h                                # written exactly once
    cn_ref[...] = c


# ------------------------------- JAX wrapper ----------------------------------

def full_model_body_motion_forward(fused, x, x_lens, body_motor,
                                   imu_linear, imu_gyro,
                                   hidden_state=None, hidden_cell=None):
    # imu_linear / imu_gyro are accepted but unused, exactly as in the PyTorch forward.
    del imu_linear, imu_gyro
    B, T, C, H, W = x.shape
    assert H == 16 and W == 16, "kernel specialised for 16x16 frames (conv 3x3/s2/p1)"
    Hh = fused["w_hh"].shape[0]
    HO = (H + 2 - 3) // 2 + 1                     # conv output rows (=8)
    TB = T * B

    # Pad + row-phase split (one fused XLA transform on a ~80 KB array).
    # Row index = u*T*B + t*B + b, lane = c*(W+2) + padded_col; inside the kernel
    # every stride-2 row selection becomes a contiguous, 16-aligned slice.
    xp = jnp.pad(x, ((0, 0), (0, 0), (0, 0), (1, 1), (1, 1)))
    xrows = (xp.reshape(B, T, C, HO + 1, 2, W + 2)
               .transpose(4, 3, 1, 0, 2, 5)
               .reshape(2, (HO + 1) * TB, C * (W + 2))
               .astype(jnp.bfloat16))

    motor_tm = jnp.transpose(body_motor, (1, 0)).reshape(TB, 1).astype(jnp.float32)
    lens2d = x_lens.astype(jnp.int32).reshape(B, 1)

    if hidden_state is None:
        hidden_state = jnp.zeros((B, Hh), jnp.float32)
    if hidden_cell is None:
        hidden_cell = jnp.zeros((B, Hh), jnp.float32)

    # Advisory cost estimate for XLA scheduling around this sub-microsecond kernel.
    n_conv = fused["w_row"].shape[-1]              # Wo*cout
    kdim = fused["w_row"].shape[1]                 # C*(W+2)
    g4 = 4 * Hh
    flops = int(2 * (3 * HO * TB * kdim * n_conv + HO * TB * n_conv * g4
                     + T * B * Hh * g4))
    transcendentals = int(T * B * (2 * g4 + Hh))
    bytes_accessed = int(xrows.size * 2 + fused["w_row"].size * 2
                         + fused["w_fused_r"].size * 2 + fused["w_hh"].size * 4
                         + fused["b_fused"].size * 4 + fused["w_motor"].size * 4
                         + fused["b_conv_row"].size * 4 + motor_tm.size * 4
                         + lens2d.size * 4 + B * (T * Hh + 2 * Hh) * 4)

    # NOTE: whole-array-in-VMEM is fine here (<1 MiB total).  If B*T grows by
    # >100x, add a batch-tiled grid axis over frames (keep the T loop inside)
    # to stay under v7x's 64 MiB VMEM.
    out, h_n, c_n = pl.pallas_call(
        functools.partial(fused_body_motion_kernel, T=T, B=B, Hh=Hh, HO=HO),
        out_shape=(
            jax.ShapeDtypeStruct((B, T * Hh), jnp.float32),
            jax.ShapeDtypeStruct((B, Hh), jnp.float32),
            jax.ShapeDtypeStruct((B, Hh), jnp.float32),
        ),
        cost_estimate=pl.CostEstimate(flops=flops, transcendentals=transcendentals,
                                      bytes_accessed=bytes_accessed),
        compiler_params=pltpu.CompilerParams(vmem_limit_bytes=32 * 1024 * 1024),
    )(xrows, fused["w_row"], fused["b_conv_row"], fused["w_fused_r"],
      fused["w_motor"], fused["b_fused"], fused["w_hh"],
      motor_tm, lens2d, hidden_state, hidden_cell)

    outputs = out.reshape(B, T, Hh)                # free view reshape, no transpose
    # output_lengths == x_lens (pad_packed_sequence); hidden/cell as (num_layers=1, B, H)
    return outputs, x_lens, h_n[None], c_n[None]


# --------------------------- parameters & offline folding --------------------

def init_params(key, chan=4, cout=8, k=3, ho=8, wo=8, feat=31, hidden=32):
    """PyTorch-style parameterization (conv + fc + LSTM with gate order i,f,g,o)."""
    ks = jax.random.split(key, 7)
    s = 0.1
    d_in = feat + 1
    return {
        "w_conv": s * jax.random.normal(ks[0], (chan * k * k, cout), jnp.float32),
        "b_conv": s * jax.random.normal(ks[1], (1, cout), jnp.float32),
        "w_fc": s * jax.random.normal(ks[2], (cout * ho * wo, feat), jnp.float32),
        "b_fc": s * jax.random.normal(ks[3], (1, feat), jnp.float32),
        "w_ih": s * jax.random.normal(ks[4], (d_in, 4 * hidden), jnp.float32),
        "w_hh": s * jax.random.normal(ks[5], (hidden, 4 * hidden), jnp.float32),
        "b_lstm": s * jax.random.normal(ks[6], (1, 4 * hidden), jnp.float32),
    }


def prepare_fused_params(params, *, chan=4, cout=8, k=3, ho=8, wo=8,
                         feat=31, hidden=32, wpad=18):
    """Offline weight folding (pure layout/algebra, done once at init):
       * permute gate columns (i,f,g,o) -> (i,f,o,g)
       * build 'row-band' conv weights so the 3x3/s2 conv becomes 3 matmuls
       * permute w_fc rows NCHW -> NHWC and fold fc into the LSTM input projection
       * reshape the fused projection to (HO, Wo*cout, 4H) so the kernel
         consumes the conv output without any relayout."""
    H4 = 4 * hidden
    gp = np.concatenate([np.arange(0, hidden), np.arange(hidden, 2 * hidden),
                         np.arange(3 * hidden, 4 * hidden),
                         np.arange(2 * hidden, 3 * hidden)])
    w_ih = np.asarray(params["w_ih"])[:, gp]
    w_hh = np.asarray(params["w_hh"])[:, gp]
    b_lstm = np.asarray(params["b_lstm"])[:, gp]

    # Row-band conv weights: w_row[i][(c, w), (b, oc)] = Wconv[oc, c, i, w - 2b]
    w_conv = np.asarray(params["w_conv"])          # (chan*k*k, cout), row = c*9+i*3+j
    w_row = np.zeros((k, chan * wpad, wo * cout), np.float32)
    for i in range(k):
        for j in range(k):
            for c in range(chan):
                for b in range(wo):
                    w = 2 * b + j
                    w_row[i, c * wpad + w, b * cout:(b + 1) * cout] = \
                        w_conv[c * k * k + i * k + j, :]
    b_conv_row = np.tile(np.asarray(params["b_conv"]).reshape(1, cout), (1, wo))

    # Fold fc (no activation) into the LSTM input projection.
    P = ho * wo
    pp, cc = np.meshgrid(np.arange(P), np.arange(cout), indexing="ij")
    src = (cc * P + pp).reshape(-1)                # w_fc_nhwc[p*cout+c] = w_fc[c*P+p]
    w_fc_nhwc = np.asarray(params["w_fc"])[src, :]
    w_fused = w_fc_nhwc @ w_ih[:feat, :]                              # (cout*P, 4H)
    b_fused = np.asarray(params["b_fc"]) @ w_ih[:feat, :] + b_lstm    # (1, 4H)
    w_motor = w_ih[feat:feat + 1, :]                                  # (1, 4H)

    return {
        "w_row": jnp.asarray(w_row, jnp.bfloat16),
        "b_conv_row": jnp.asarray(b_conv_row, jnp.float32),
        "w_fused_r": jnp.asarray(w_fused.reshape(ho, wo * cout, H4), jnp.bfloat16),
        "w_motor": jnp.asarray(w_motor, jnp.float32),
        "b_fused": jnp.asarray(b_fused, jnp.float32),
        "w_hh": jnp.asarray(w_hh, jnp.float32),
    }


# ------------------------------ pure-JAX reference ----------------------------

def reference_forward(params, x, x_lens, body_motor, *, hidden=32):
    """f32 reference mirroring the PyTorch module (conv -> fc -> masked LSTM)."""
    B, T, C, H, W = x.shape
    cout = params["b_conv"].shape[1]
    k = 3
    Wc = jnp.asarray(params["w_conv"]).reshape(C, k, k, cout).transpose(3, 0, 1, 2)
    xf = x.reshape(B * T, C, H, W)
    conv = jax.lax.conv_general_dilated(
        xf, Wc, window_strides=(2, 2), padding=((1, 1), (1, 1)),
        dimension_numbers=("NCHW", "OIHW", "NCHW"))
    conv = jnp.maximum(conv + params["b_conv"].reshape(1, cout, 1, 1), 0.0)
    feat = conv.reshape(B * T, -1) @ params["w_fc"] + params["b_fc"]
    seq = jnp.concatenate([feat.reshape(B, T, -1), body_motor[..., None]], axis=2)

    w_ih, w_hh, b = params["w_ih"], params["w_hh"], params["b_lstm"]
    h = jnp.zeros((B, hidden), jnp.float32)
    c = jnp.zeros((B, hidden), jnp.float32)
    outs = []
    for t in range(T):
        g = seq[:, t, :] @ w_ih + h @ w_hh + b     # torch gate order (i, f, g, o)
        i_g = jax.nn.sigmoid(g[:, 0 * hidden:1 * hidden])
        f_g = jax.nn.sigmoid(g[:, 1 * hidden:2 * hidden])
        g_g = jnp.tanh(g[:, 2 * hidden:3 * hidden])
        o_g = jax.nn.sigmoid(g[:, 3 * hidden:4 * hidden])
        c_new = f_g * c + i_g * g_g
        h_new = o_g * jnp.tanh(c_new)
        m = (t < x_lens).astype(jnp.float32)[:, None]
        h = m * h_new + (1.0 - m) * h
        c = m * c_new + (1.0 - m) * c
        outs.append(m * h_new)
    return jnp.stack(outs, axis=1), h, c


# --------------------------------- main ---------------------------------------

if __name__ == "__main__":
    key = jax.random.PRNGKey(0)
    k_x, k_m, k_il, k_ig, k_p = jax.random.split(key, 5)

    B, T, C, H, W = 2, 8, 4, 16, 16
    x = jax.random.normal(k_x, (B, T, C, H, W), jnp.float32)
    x_lens = jnp.array([8, 5], jnp.int32)
    body_motor = jax.random.normal(k_m, (B, T), jnp.float32)
    imu_linear = jax.random.normal(k_il, (B, T, 3), jnp.float32)   # unused by forward
    imu_gyro = jax.random.normal(k_ig, (B, T, 3), jnp.float32)     # unused by forward

    params = init_params(k_p, chan=C, cout=8, k=3, ho=8, wo=8, feat=31, hidden=32)
    fused = prepare_fused_params(params, chan=C, cout=8, k=3, ho=8, wo=8,
                                 feat=31, hidden=32)

    fwd = jax.jit(full_model_body_motion_forward)
    outputs, output_lengths, h_n, c_n = fwd(
        fused, x, x_lens, body_motor, imu_linear, imu_gyro)
    jax.block_until_ready((outputs, output_lengths, h_n, c_n))

    assert outputs.shape == (B, T, 32)
    assert h_n.shape == (1, B, 32) and c_n.shape == (1, B, 32)

    # Correctness against an f32 pure-JAX reference (bf16 MXU => loose tolerance).
    ref_out, ref_h, ref_c = reference_forward(params, x, x_lens, body_motor, hidden=32)
    np.testing.assert_allclose(np.asarray(outputs), np.asarray(ref_out), atol=0.08)
    np.testing.assert_allclose(np.asarray(h_n[0]), np.asarray(ref_h), atol=0.08)
    np.testing.assert_allclose(np.asarray(c_n[0]), np.asarray(ref_c), atol=0.12)

    print("KERNEL_OK")
</pallas_src>

<mosaic_0001>
module attributes {stable_mosaic.version = 11 : i64} {
  func.func @fused_body_motion_kernel(%arg0: memref<2x144x72xbf16, #tpu.memory_space<vmem>>, %arg1: memref<3x72x64xbf16, #tpu.memory_space<vmem>>, %arg2: memref<1x64xf32, #tpu.memory_space<vmem>>, %arg3: memref<8x64x128xbf16, #tpu.memory_space<vmem>>, %arg4: memref<1x128xf32, #tpu.memory_space<vmem>>, %arg5: memref<1x128xf32, #tpu.memory_space<vmem>>, %arg6: memref<32x128xf32, #tpu.memory_space<vmem>>, %arg7: memref<16x1xf32, #tpu.memory_space<vmem>>, %arg8: memref<2x1xi32, #tpu.memory_space<vmem>>, %arg9: memref<2x32xf32, #tpu.memory_space<vmem>>, %arg10: memref<2x32xf32, #tpu.memory_space<vmem>>, %arg11: memref<2x256xf32, #tpu.memory_space<vmem>>, %arg12: memref<2x32xf32, #tpu.memory_space<vmem>>, %arg13: memref<2x32xf32, #tpu.memory_space<vmem>>) attributes {dimension_semantics = [], scalar_prefetch = 0 : i64, scratch_operands = 0 : i64, tpu.core_type = #tpu.core_type<tc>} {
    %c0 = arith.constant 0 : index
    %c0_0 = arith.constant 0 : index
    %c0_1 = arith.constant 0 : index
    %0 = vector.load %arg0[%c0, %c0_0, %c0_1] : memref<2x144x72xbf16, #tpu.memory_space<vmem>>, vector<1x144x72xbf16>
    %1 = vector.shape_cast %0 : vector<1x144x72xbf16> to vector<144x72xbf16>
    %c1 = arith.constant 1 : index
    %c0_2 = arith.constant 0 : index
    %c0_3 = arith.constant 0 : index
    %2 = vector.load %arg0[%c1, %c0_2, %c0_3] : memref<2x144x72xbf16, #tpu.memory_space<vmem>>, vector<1x144x72xbf16>
    %3 = vector.shape_cast %2 : vector<1x144x72xbf16> to vector<144x72xbf16>
    %4 = vector.extract_strided_slice %1 {offsets = [0, 0], sizes = [128, 72], strides = [1, 1]} : vector<144x72xbf16> to vector<128x72xbf16>
    %c0_4 = arith.constant 0 : index
    %c0_5 = arith.constant 0 : index
    %c0_6 = arith.constant 0 : index
    %5 = vector.load %arg1[%c0_4, %c0_5, %c0_6] : memref<3x72x64xbf16, #tpu.memory_space<vmem>>, vector<1x72x64xbf16>
    %6 = vector.shape_cast %5 : vector<1x72x64xbf16> to vector<72x64xbf16>
    %cst = arith.constant dense<0.000000e+00> : vector<128x64xf32>
    %7 = tpu.matmul %4, %6, %cst {dimension_numbers = #tpu.dot_dimension_numbers<[1], [0], [0], [1], [0, 0, 1, 1], [], []>} : vector<128x72xbf16>, vector<72x64xbf16>, vector<128x64xf32> -> vector<128x64xf32>
    %8 = vector.extract_strided_slice %3 {offsets = [0, 0], sizes = [128, 72], strides = [1, 1]} : vector<144x72xbf16> to vector<128x72xbf16>
    %c1_7 = arith.constant 1 : index
    %c0_8 = arith.constant 0 : index
    %c0_9 = arith.constant 0 : index
    %9 = vector.load %arg1[%c1_7, %c0_8, %c0_9] : memref<3x72x64xbf16, #tpu.memory_space<vmem>>, vector<1x72x64xbf16>
    %10 = vector.shape_cast %9 : vector<1x72x64xbf16> to vector<72x64xbf16>
    %cst_10 = arith.constant dense<0.000000e+00> : vector<128x64xf32>
    %11 = tpu.matmul %8, %10, %cst_10 {dimension_numbers = #tpu.dot_dimension_numbers<[1], [0], [0], [1], [0, 0, 1, 1], [], []>} : vector<128x72xbf16>, vector<72x64xbf16>, vector<128x64xf32> -> vector<128x64xf32>
    %12 = arith.addf %7, %11 : vector<128x64xf32>
    %13 = vector.extract_strided_slice %1 {offsets = [16, 0], sizes = [128, 72], strides = [1, 1]} : vector<144x72xbf16> to vector<128x72xbf16>
    %c2 = arith.constant 2 : index
    %c0_11 = arith.constant 0 : index
    %c0_12 = arith.constant 0 : index
    %14 = vector.load %arg1[%c2, %c0_11, %c0_12] : memref<3x72x64xbf16, #tpu.memory_space<vmem>>, vector<1x72x64xbf16>
    %15 = vector.shape_cast %14 : vector<1x72x64xbf16> to vector<72x64xbf16>
    %cst_13 = arith.constant dense<0.000000e+00> : vector<128x64xf32>
    %16 = tpu.matmul %13, %15, %cst_13 {dimension_numbers = #tpu.dot_dimension_numbers<[1], [0], [0], [1], [0, 0, 1, 1], [], []>} : vector<128x72xbf16>, vector<72x64xbf16>, vector<128x64xf32> -> vector<128x64xf32>
    %17 = arith.addf %12, %16 : vector<128x64xf32>
    %c0_14 = arith.constant 0 : index
    %c0_15 = arith.constant 0 : index
    %18 = vector.load %arg2[%c0_14, %c0_15] : memref<1x64xf32, #tpu.memory_space<vmem>>, vector<1x64xf32>
    %19 = vector.broadcast %18 : vector<1x64xf32> to vector<128x64xf32>
    %20 = arith.addf %17, %19 : vector<128x64xf32>
    %cst_16 = arith.constant 0.000000e+00 : f32
    %21 = vector.broadcast %cst_16 : f32 to vector<128x64xf32>
    %22 = arith.maximumf %20, %21 : vector<128x64xf32>
    %23 = arith.truncf %22 : vector<128x64xf32> to vector<128x64xbf16>
    %c0_17 = arith.constant 0 : index
    %c0_18 = arith.constant 0 : index
    %24 = vector.load %arg7[%c0_17, %c0_18] : memref<16x1xf32, #tpu.memory_space<vmem>>, vector<16x1xf32>
    %c0_19 = arith.constant 0 : index
    %c0_20 = arith.constant 0 : index
    %25 = vector.load %arg4[%c0_19, %c0_20] : memref<1x128xf32, #tpu.memory_space<vmem>>, vector<1x128xf32>
    %26 = vector.broadcast %24 : vector<16x1xf32> to vector<16x128xf32>
    %27 = vector.broadcast %25 : vector<1x128xf32> to vector<16x128xf32>
    %28 = arith.mulf %26, %27 : vector<16x128xf32>
    %c0_21 = arith.constant 0 : index
    %c0_22 = arith.constant 0 : index
    %29 = vector.load %arg5[%c0_21, %c0_22] : memref<1x128xf32, #tpu.memory_space<vmem>>, vector<1x128xf32>
    %30 = vector.broadcast %29 : vector<1x128xf32> to vector<16x128xf32>
    %31 = arith.addf %28, %30 : vector<16x128xf32>
    %32 = vector.extract_strided_slice %23 {offsets = [0, 0], sizes = [16, 64], strides = [1, 1]} : vector<128x64xbf16> to vector<16x64xbf16>
    %c0_23 = arith.constant 0 : index
    %c0_24 = arith.constant 0 : index
    %c0_25 = arith.constant 0 : index
    %33 = vector.load %arg3[%c0_23, %c0_24, %c0_25] : memref<8x64x128xbf16, #tpu.memory_space<vmem>>, vector<1x64x128xbf16>
    %34 = vector.shape_cast %33 : vector<1x64x128xbf16> to vector<64x128xbf16>
    %cst_26 = arith.constant dense<0.000000e+00> : vector<16x128xf32>
    %35 = tpu.matmul %32, %34, %cst_26 {dimension_numbers = #tpu.dot_dimension_numbers<[1], [0], [0], [1], [0, 0, 1, 1], [], []>} : vector<16x64xbf16>, vector<64x128xbf16>, vector<16x128xf32> -> vector<16x128xf32>
    %36 = arith.addf %31, %35 : vector<16x128xf32>
    %37 = vector.extract_strided_slice %23 {offsets = [16, 0], sizes = [16, 64], strides = [1, 1]} : vector<128x64xbf16> to vector<16x64xbf16>
    %c1_27 = arith.constant 1 : index
    %c0_28 = arith.constant 0 : index
    %c0_29 = arith.constant 0 : index
    %38 = vector.load %arg3[%c1_27, %c0_28, %c0_29] : memref<8x64x128xbf16, #tpu.memory_space<vmem>>, vector<1x64x128xbf16>
    %39 = vector.shape_cast %38 : vector<1x64x128xbf16> to vector<64x128xbf16>
    %cst_30 = arith.constant dense<0.000000e+00> : vector<16x128xf32>
    %40 = tpu.matmul %37, %39, %cst_30 {dimension_numbers = #tpu.dot_dimension_numbers<[1], [0], [0], [1], [0, 0, 1, 1], [], []>} : vector<16x64xbf16>, vector<64x128xbf16>, vector<16x128xf32> -> vector<16x128xf32>
    %41 = arith.addf %36, %40 : vector<16x128xf32>
    %42 = vector.extract_strided_slice %23 {offsets = [32, 0], sizes = [16, 64], strides = [1, 1]} : vector<128x64xbf16> to vector<16x64xbf16>
    %c2_31 = arith.constant 2 : index
    %c0_32 = arith.constant 0 : index
    %c0_33 = arith.constant 0 : index
    %43 = vector.load %arg3[%c2_31, %c0_32, %c0_33] : memref<8x64x128xbf16, #tpu.memory_space<vmem>>, vector<1x64x128xbf16>
    %44 = vector.shape_cast %43 : vector<1x64x128xbf16> to vector<64x128xbf16>
    %cst_34 = arith.constant dense<0.000000e+00> : vector<16x128xf32>
    %45 = tpu.matmul %42, %44, %cst_34 {dimension_numbers = #tpu.dot_dimension_numbers<[1], [0], [0], [1], [0, 0, 1, 1], [], []>} : vector<16x64xbf16>, vector<64x128xbf16>, vector<16x128xf32> -> vector<16x128xf32>
    %46 = arith.addf %41, %45 : vector<16x128xf32>
    %47 = vector.extract_strided_slice %23 {offsets = [48, 0], sizes = [16, 64], strides = [1, 1]} : vector<128x64xbf16> to vector<16x64xbf16>
    %c3 = arith.constant 3 : index
    %c0_35 = arith.constant 0 : index
    %c0_36 = arith.constant 0 : index
    %48 = vector.load %arg3[%c3, %c0_35, %c0_36] : memref<8x64x128xbf16, #tpu.memory_space<vmem>>, vector<1x64x128xbf16>
    %49 = vector.shape_cast %48 : vector<1x64x128xbf16> to vector<64x128xbf16>
    %cst_37 = arith.constant dense<0.000000e+00> : vector<16x128xf32>
    %50 = tpu.matmul %47, %49, %cst_37 {dimension_numbers = #tpu.dot_dimension_numbers<[1], [0], [0], [1], [0, 0, 1, 1], [], []>} : vector<16x64xbf16>, vector<64x128xbf16>, vector<16x128xf32> -> vector<16x128xf32>
    %51 = arith.addf %46, %50 : vector<16x128xf32>
    %52 = vector.extract_strided_slice %23 {offsets = [64, 0], sizes = [16, 64], strides = [1, 1]} : vector<128x64xbf16> to vector<16x64xbf16>
    %c4 = arith.constant 4 : index
    %c0_38 = arith.constant 0 : index
    %c0_39 = arith.constant 0 : index
    %53 = vector.load %arg3[%c4, %c0_38, %c0_39] : memref<8x64x128xbf16, #tpu.memory_space<vmem>>, vector<1x64x128xbf16>
    %54 = vector.shape_cast %53 : vector<1x64x128xbf16> to vector<64x128xbf16>
    %cst_40 = arith.constant dense<0.000000e+00> : vector<16x128xf32>
    %55 = tpu.matmul %52, %54, %cst_40 {dimension_numbers = #tpu.dot_dimension_numbers<[1], [0], [0], [1], [0, 0, 1, 1], [], []>} : vector<16x64xbf16>, vector<64x128xbf16>, vector<16x128xf32> -> vector<16x128xf32>
    %56 = arith.addf %51, %55 : vector<16x128xf32>
    %57 = vector.extract_strided_slice %23 {offsets = [80, 0], sizes = [16, 64], strides = [1, 1]} : vector<128x64xbf16> to vector<16x64xbf16>
    %c5 = arith.constant 5 : index
    %c0_41 = arith.constant 0 : index
    %c0_42 = arith.constant 0 : index
    %58 = vector.load %arg3[%c5, %c0_41, %c0_42] : memref<8x64x128xbf16, #tpu.memory_space<vmem>>, vector<1x64x128xbf16>
    %59 = vector.shape_cast %58 : vector<1x64x128xbf16> to vector<64x128xbf16>
    %cst_43 = arith.constant dense<0.000000e+00> : vector<16x128xf32>
    %60 = tpu.matmul %57, %59, %cst_43 {dimension_numbers = #tpu.dot_dimension_numbers<[1], [0], [0], [1], [0, 0, 1, 1], [], []>} : vector<16x64xbf16>, vector<64x128xbf16>, vector<16x128xf32> -> vector<16x128xf32>
    %61 = arith.addf %56, %60 : vector<16x128xf32>
    %62 = vector.extract_strided_slice %23 {offsets = [96, 0], sizes = [16, 64], strides = [1, 1]} : vector<128x64xbf16> to vector<16x64xbf16>
    %c6 = arith.constant 6 : index
    %c0_44 = arith.constant 0 : index
    %c0_45 = arith.constant 0 : index
    %63 = vector.load %arg3[%c6, %c0_44, %c0_45] : memref<8x64x128xbf16, #tpu.memory_space<vmem>>, vector<1x64x128xbf16>
    %64 = vector.shape_cast %63 : vector<1x64x128xbf16> to vector<64x128xbf16>
    %cst_46 = arith.constant dense<0.000000e+00> : vector<16x128xf32>
    %65 = tpu.matmul %62, %64, %cst_46 {dimension_numbers = #tpu.dot_dimension_numbers<[1], [0], [0], [1], [0, 0, 1, 1], [], []>} : vector<16x64xbf16>, vector<64x128xbf16>, vector<16x128xf32> -> vector<16x128xf32>
    %66 = arith.addf %61, %65 : vector<16x128xf32>
    %67 = vector.extract_strided_slice %23 {offsets = [112, 0], sizes = [16, 64], strides = [1, 1]} : vector<128x64xbf16> to vector<16x64xbf16>
    %c7 = arith.constant 7 : index
    %c0_47 = arith.constant 0 : index
    %c0_48 = arith.constant 0 : index
    %68 = vector.load %arg3[%c7, %c0_47, %c0_48] : memref<8x64x128xbf16, #tpu.memory_space<vmem>>, vector<1x64x128xbf16>
    %69 = vector.shape_cast %68 : vector<1x64x128xbf16> to vector<64x128xbf16>
    %cst_49 = arith.constant dense<0.000000e+00> : vector<16x128xf32>
    %70 = tpu.matmul %67, %69, %cst_49 {dimension_numbers = #tpu.dot_dimension_numbers<[1], [0], [0], [1], [0, 0, 1, 1], [], []>} : vector<16x64xbf16>, vector<64x128xbf16>, vector<16x128xf32> -> vector<16x128xf32>
    %71 = arith.addf %66, %70 : vector<16x128xf32>
    %c0_50 = arith.constant 0 : index
    %c0_51 = arith.constant 0 : index
    %72 = vector.load %arg9[%c0_50, %c0_51] : memref<2x32xf32, #tpu.memory_space<vmem>>, vector<2x32xf32>
    %c0_52 = arith.constant 0 : index
    %c0_53 = arith.constant 0 : index
    %73 = vector.load %arg10[%c0_52, %c0_53] : memref<2x32xf32, #tpu.memory_space<vmem>>, vector<2x32xf32>
    %c0_54 = arith.constant 0 : index
    %c0_55 = arith.constant 0 : index
    %74 = vector.load %arg8[%c0_54, %c0_55] : memref<2x1xi32, #tpu.memory_space<vmem>>, vector<2x1xi32>
    %c0_56 = arith.constant 0 : index
    %c0_57 = arith.constant 0 : index
    %75 = vector.load %arg6[%c0_56, %c0_57] : memref<32x128xf32, #tpu.memory_space<vmem>>, vector<32x128xf32>
    %76 = vector.extract_strided_slice %71 {offsets = [0, 0], sizes = [2, 128], strides = [1, 1]} : vector<16x128xf32> to vector<2x128xf32>
    %cst_58 = arith.constant dense<0.000000e+00> : vector<2x128xf32>
    %77 = tpu.matmul %72, %75, %cst_58 {dimension_numbers = #tpu.dot_dimension_numbers<[1], [0], [0], [1], [0, 0, 1, 1], [], []>} : vector<2x32xf32>, vector<32x128xf32>, vector<2x128xf32> -> vector<2x128xf32>
    %78 = arith.addf %76, %77 : vector<2x128xf32>
    %79 = arith.negf %78 : vector<2x128xf32>
    %80 = math.exp %79 : vector<2x128xf32>
    %cst_59 = arith.constant 1.000000e+00 : f32
    %81 = vector.broadcast %cst_59 : f32 to vector<2x128xf32>
    %82 = arith.addf %81, %80 : vector<2x128xf32>
    %83 = arith.divf %81, %82 : vector<2x128xf32>
    %84 = math.tanh %78 : vector<2x128xf32>
    %85 = vector.extract_strided_slice %83 {offsets = [0, 0], sizes = [2, 32], strides = [1, 1]} : vector<2x128xf32> to vector<2x32xf32>
    %86 = vector.extract_strided_slice %83 {offsets = [0, 32], sizes = [2, 32], strides = [1, 1]} : vector<2x128xf32> to vector<2x32xf32>
    %87 = vector.extract_strided_slice %83 {offsets = [0, 64], sizes = [2, 32], strides = [1, 1]} : vector<2x128xf32> to vector<2x32xf32>
    %88 = vector.extract_strided_slice %84 {offsets = [0, 96], sizes = [2, 32], strides = [1, 1]} : vector<2x128xf32> to vector<2x32xf32>
    %89 = arith.mulf %86, %73 : vector<2x32xf32>
    %90 = arith.mulf %85, %88 : vector<2x32xf32>
    %91 = arith.addf %89, %90 : vector<2x32xf32>
    %92 = math.tanh %91 : vector<2x32xf32>
    %93 = arith.mulf %87, %92 : vector<2x32xf32>
    %c0_i32 = arith.constant 0 : i32
    %94 = vector.broadcast %c0_i32 : i32 to vector<2x1xi32>
    %95 = arith.cmpi sgt, %74, %94 : vector<2x1xi32>
    %96 = arith.extui %95 : vector<2x1xi1> to vector<2x1xi32>
    %97 = arith.sitofp %96 : vector<2x1xi32> to vector<2x1xf32>
    %98 = vector.broadcast %97 : vector<2x1xf32> to vector<2x32xf32>
    %99 = arith.mulf %98, %93 : vector<2x32xf32>
    %cst_60 = arith.constant 1.000000e+00 : f32
    %100 = vector.broadcast %cst_60 : f32 to vector<2x1xf32>
    %101 = arith.subf %100, %97 : vector<2x1xf32>
    %102 = vector.broadcast %101 : vector<2x1xf32> to vector<2x32xf32>
    %103 = arith.mulf %102, %72 : vector<2x32xf32>
    %104 = arith.addf %99, %103 : vector<2x32xf32>
    %105 = vector.broadcast %97 : vector<2x1xf32> to vector<2x32xf32>
    %106 = arith.mulf %105, %91 : vector<2x32xf32>
    %cst_61 = arith.constant 1.000000e+00 : f32
    %107 = vector.broadcast %cst_61 : f32 to vector<2x1xf32>
    %108 = arith.subf %107, %97 : vector<2x1xf32>
    %109 = vector.broadcast %108 : vector<2x1xf32> to vector<2x32xf32>
    %110 = arith.mulf %109, %73 : vector<2x32xf32>
    %111 = arith.addf %106, %110 : vector<2x32xf32>
    %112 = vector.broadcast %97 : vector<2x1xf32> to vector<2x32xf32>
    %113 = arith.mulf %112, %93 : vector<2x32xf32>
    %114 = vector.extract_strided_slice %71 {offsets = [2, 0], sizes = [2, 128], strides = [1, 1]} : vector<16x128xf32> to vector<2x128xf32>
    %cst_62 = arith.constant dense<0.000000e+00> : vector<2x128xf32>
    %115 = tpu.matmul %104, %75, %cst_62 {dimension_numbers = #tpu.dot_dimension_numbers<[1], [0], [0], [1], [0, 0, 1, 1], [], []>} : vector<2x32xf32>, vector<32x128xf32>, vector<2x128xf32> -> vector<2x128xf32>
    %116 = arith.addf %114, %115 : vector<2x128xf32>
    %117 = arith.negf %116 : vector<2x128xf32>
    %118 = math.exp %117 : vector<2x128xf32>
    %cst_63 = arith.constant 1.000000e+00 : f32
    %119 = vector.broadcast %cst_63 : f32 to vector<2x128xf32>
    %120 = arith.addf %119, %118 : vector<2x128xf32>
    %121 = arith.divf %119, %120 : vector<2x128xf32>
    %122 = math.tanh %116 : vector<2x128xf32>
    %123 = vector.extract_strided_slice %121 {offsets = [0, 0], sizes = [2, 32], strides = [1, 1]} : vector<2x128xf32> to vector<2x32xf32>
    %124 = vector.extract_strided_slice %121 {offsets = [0, 32], sizes = [2, 32], strides = [1, 1]} : vector<2x128xf32> to vector<2x32xf32>
    %125 = vector.extract_strided_slice %121 {offsets = [0, 64], sizes = [2, 32], strides = [1, 1]} : vector<2x128xf32> to vector<2x32xf32>
    %126 = vector.extract_strided_slice %122 {offsets = [0, 96], sizes = [2, 32], strides = [1, 1]} : vector<2x128xf32> to vector<2x32xf32>
    %127 = arith.mulf %124, %111 : vector<2x32xf32>
    %128 = arith.mulf %123, %126 : vector<2x32xf32>
    %129 = arith.addf %127, %128 : vector<2x32xf32>
    %130 = math.tanh %129 : vector<2x32xf32>
    %131 = arith.mulf %125, %130 : vector<2x32xf32>
    %c1_i32 = arith.constant 1 : i32
    %132 = vector.broadcast %c1_i32 : i32 to vector<2x1xi32>
    %133 = arith.cmpi sgt, %74, %132 : vector<2x1xi32>
    %134 = arith.extui %133 : vector<2x1xi1> to vector<2x1xi32>
    %135 = arith.sitofp %134 : vector<2x1xi32> to vector<2x1xf32>
    %136 = vector.broadcast %135 : vector<2x1xf32> to vector<2x32xf32>
    %137 = arith.mulf %136, %131 : vector<2x32xf32>
    %cst_64 = arith.constant 1.000000e+00 : f32
    %138 = vector.broadcast %cst_64 : f32 to vector<2x1xf32>
    %139 = arith.subf %138, %135 : vector<2x1xf32>
    %140 = vector.broadcast %139 : vector<2x1xf32> to vector<2x32xf32>
    %141 = arith.mulf %140, %104 : vector<2x32xf32>
    %142 = arith.addf %137, %141 : vector<2x32xf32>
    %143 = vector.broadcast %135 : vector<2x1xf32> to vector<2x32xf32>
    %144 = arith.mulf %143, %129 : vector<2x32xf32>
    %cst_65 = arith.constant 1.000000e+00 : f32
    %145 = vector.broadcast %cst_65 : f32 to vector<2x1xf32>
    %146 = arith.subf %145, %135 : vector<2x1xf32>
    %147 = vector.broadcast %146 : vector<2x1xf32> to vector<2x32xf32>
    %148 = arith.mulf %147, %111 : vector<2x32xf32>
    %149 = arith.addf %144, %148 : vector<2x32xf32>
    %150 = vector.broadcast %135 : vector<2x1xf32> to vector<2x32xf32>
    %151 = arith.mulf %150, %131 : vector<2x32xf32>
    %152 = vector.extract_strided_slice %71 {offsets = [4, 0], sizes = [2, 128], strides = [1, 1]} : vector<16x128xf32> to vector<2x128xf32>
    %cst_66 = arith.constant dense<0.000000e+00> : vector<2x128xf32>
    %153 = tpu.matmul %142, %75, %cst_66 {dimension_numbers = #tpu.dot_dimension_numbers<[1], [0], [0], [1], [0, 0, 1, 1], [], []>} : vector<2x32xf32>, vector<32x128xf32>, vector<2x128xf32> -> vector<2x128xf32>
    %154 = arith.addf %152, %153 : vector<2x128xf32>
    %155 = arith.negf %154 : vector<2x128xf32>
    %156 = math.exp %155 : vector<2x128xf32>
    %cst_67 = arith.constant 1.000000e+00 : f32
    %157 = vector.broadcast %cst_67 : f32 to vector<2x128xf32>
    %158 = arith.addf %157, %156 : vector<2x128xf32>
    %159 = arith.divf %157, %158 : vector<2x128xf32>
    %160 = math.tanh %154 : vector<2x128xf32>
    %161 = vector.extract_strided_slice %159 {offsets = [0, 0], sizes = [2, 32], strides = [1, 1]} : vector<2x128xf32> to vector<2x32xf32>
    %162 = vector.extract_strided_slice %159 {offsets = [0, 32], sizes = [2, 32], strides = [1, 1]} : vector<2x128xf32> to vector<2x32xf32>
    %163 = vector.extract_strided_slice %159 {offsets = [0, 64], sizes = [2, 32], strides = [1, 1]} : vector<2x128xf32> to vector<2x32xf32>
    %164 = vector.extract_strided_slice %160 {offsets = [0, 96], sizes = [2, 32], strides = [1, 1]} : vector<2x128xf32> to vector<2x32xf32>
    %165 = arith.mulf %162, %149 : vector<2x32xf32>
    %166 = arith.mulf %161, %164 : vector<2x32xf32>
    %167 = arith.addf %165, %166 : vector<2x32xf32>
    %168 = math.tanh %167 : vector<2x32xf32>
    %169 = arith.mulf %163, %168 : vector<2x32xf32>
    %c2_i32 = arith.constant 2 : i32
    %170 = vector.broadcast %c2_i32 : i32 to vector<2x1xi32>
    %171 = arith.cmpi sgt, %74, %170 : vector<2x1xi32>
    %172 = arith.extui %171 : vector<2x1xi1> to vector<2x1xi32>
    %173 = arith.sitofp %172 : vector<2x1xi32> to vector<2x1xf32>
    %174 = vector.broadcast %173 : vector<2x1xf32> to vector<2x32xf32>
    %175 = arith.mulf %174, %169 : vector<2x32xf32>
    %cst_68 = arith.constant 1.000000e+00 : f32
    %176 = vector.broadcast %cst_68 : f32 to vector<2x1xf32>
    %177 = arith.subf %176, %173 : vector<2x1xf32>
    %178 = vector.broadcast %177 : vector<2x1xf32> to vector<2x32xf32>
    %179 = arith.mulf %178, %142 : vector<2x32xf32>
    %180 = arith.addf %175, %179 : vector<2x32xf32>
    %181 = vector.broadcast %173 : vector<2x1xf32> to vector<2x32xf32>
    %182 = arith.mulf %181, %167 : vector<2x32xf32>
    %cst_69 = arith.constant 1.000000e+00 : f32
    %183 = vector.broadcast %cst_69 : f32 to vector<2x1xf32>
    %184 = arith.subf %183, %173 : vector<2x1xf32>
    %185 = vector.broadcast %184 : vector<2x1xf32> to vector<2x32xf32>
    %186 = arith.mulf %185, %149 : vector<2x32xf32>
    %187 = arith.addf %182, %186 : vector<2x32xf32>
    %188 = vector.broadcast %173 : vector<2x1xf32> to vector<2x32xf32>
    %189 = arith.mulf %188, %169 : vector<2x32xf32>
    %190 = vector.extract_strided_slice %71 {offsets = [6, 0], sizes = [2, 128], strides = [1, 1]} : vector<16x128xf32> to vector<2x128xf32>
    %cst_70 = arith.constant dense<0.000000e+00> : vector<2x128xf32>
    %191 = tpu.matmul %180, %75, %cst_70 {dimension_numbers = #tpu.dot_dimension_numbers<[1], [0], [0], [1], [0, 0, 1, 1], [], []>} : vector<2x32xf32>, vector<32x128xf32>, vector<2x128xf32> -> vector<2x128xf32>
    %192 = arith.addf %190, %191 : vector<2x128xf32>
    %193 = arith.negf %192 : vector<2x128xf32>
    %194 = math.exp %193 : vector<2x128xf32>
    %cst_71 = arith.constant 1.000000e+00 : f32
    %195 = vector.broadcast %cst_71 : f32 to vector<2x128xf32>
    %196 = arith.addf %195, %194 : vector<2x128xf32>
    %197 = arith.divf %195, %196 : vector<2x128xf32>
    %198 = math.tanh %192 : vector<2x128xf32>
    %199 = vector.extract_strided_slice %197 {offsets = [0, 0], sizes = [2, 32], strides = [1, 1]} : vector<2x128xf32> to vector<2x32xf32>
    %200 = vector.extract_strided_slice %197 {offsets = [0, 32], sizes = [2, 32], strides = [1, 1]} : vector<2x128xf32> to vector<2x32xf32>
    %201 = vector.extract_strided_slice %197 {offsets = [0, 64], sizes = [2, 32], strides = [1, 1]} : vector<2x128xf32> to vector<2x32xf32>
    %202 = vector.extract_strided_slice %198 {offsets = [0, 96], sizes = [2, 32], strides = [1, 1]} : vector<2x128xf32> to vector<2x32xf32>
    %203 = arith.mulf %200, %187 : vector<2x32xf32>
    %204 = arith.mulf %199, %202 : vector<2x32xf32>
    %205 = arith.addf %203, %204 : vector<2x32xf32>
    %206 = math.tanh %205 : vector<2x32xf32>
    %207 = arith.mulf %201, %206 : vector<2x32xf32>
    %c3_i32 = arith.constant 3 : i32
    %208 = vector.broadcast %c3_i32 : i32 to vector<2x1xi32>
    %209 = arith.cmpi sgt, %74, %208 : vector<2x1xi32>
    %210 = arith.extui %209 : vector<2x1xi1> to vector<2x1xi32>
    %211 = arith.sitofp %210 : vector<2x1xi32> to vector<2x1xf32>
    %212 = vector.broadcast %211 : vector<2x1xf32> to vector<2x32xf32>
    %213 = arith.mulf %212, %207 : vector<2x32xf32>
    %cst_72 = arith.constant 1.000000e+00 : f32
    %214 = vector.broadcast %cst_72 : f32 to vector<2x1xf32>
    %215 = arith.subf %214, %211 : vector<2x1xf32>
    %216 = vector.broadcast %215 : vector<2x1xf32> to vector<2x32xf32>
    %217 = arith.mulf %216, %180 : vector<2x32xf32>
    %218 = arith.addf %213, %217 : vector<2x32xf32>
    %219 = vector.broadcast %211 : vector<2x1xf32> to vector<2x32xf32>
    %220 = arith.mulf %219, %205 : vector<2x32xf32>
    %cst_73 = arith.constant 1.000000e+00 : f32
    %221 = vector.broadcast %cst_73 : f32 to vector<2x1xf32>
    %222 = arith.subf %221, %211 : vector<2x1xf32>
    %223 = vector.broadcast %222 : vector<2x1xf32> to vector<2x32xf32>
    %224 = arith.mulf %223, %187 : vector<2x32xf32>
    %225 = arith.addf %220, %224 : vector<2x32xf32>
    %226 = vector.broadcast %211 : vector<2x1xf32> to vector<2x32xf32>
    %227 = arith.mulf %226, %207 : vector<2x32xf32>
    %228 = vector.extract_strided_slice %71 {offsets = [8, 0], sizes = [2, 128], strides = [1, 1]} : vector<16x128xf32> to vector<2x128xf32>
    %cst_74 = arith.constant dense<0.000000e+00> : vector<2x128xf32>
    %229 = tpu.matmul %218, %75, %cst_74 {dimension_numbers = #tpu.dot_dimension_numbers<[1], [0], [0], [1], [0, 0, 1, 1], [], []>} : vector<2x32xf32>, vector<32x128xf32>, vector<2x128xf32> -> vector<2x128xf32>
    %230 = arith.addf %228, %229 : vector<2x128xf32>
    %231 = arith.negf %230 : vector<2x128xf32>
    %232 = math.exp %231 : vector<2x128xf32>
    %cst_75 = arith.constant 1.000000e+00 : f32
    %233 = vector.broadcast %cst_75 : f32 to vector<2x128xf32>
    %234 = arith.addf %233, %232 : vector<2x128xf32>
    %235 = arith.divf %233, %234 : vector<2x128xf32>
    %236 = math.tanh %230 : vector<2x128xf32>
    %237 = vector.extract_strided_slice %235 {offsets = [0, 0], sizes = [2, 32], strides = [1, 1]} : vector<2x128xf32> to vector<2x32xf32>
    %238 = vector.extract_strided_slice %235 {offsets = [0, 32], sizes = [2, 32], strides = [1, 1]} : vector<2x128xf32> to vector<2x32xf32>
    %239 = vector.extract_strided_slice %235 {offsets = [0, 64], sizes = [2, 32], strides = [1, 1]} : vector<2x128xf32> to vector<2x32xf32>
    %240 = vector.extract_strided_slice %236 {offsets = [0, 96], sizes = [2, 32], strides = [1, 1]} : vector<2x128xf32> to vector<2x32xf32>
    %241 = arith.mulf %238, %225 : vector<2x32xf32>
    %242 = arith.mulf %237, %240 : vector<2x32xf32>
    %243 = arith.addf %241, %242 : vector<2x32xf32>
    %244 = math.tanh %243 : vector<2x32xf32>
    %245 = arith.mulf %239, %244 : vector<2x32xf32>
    %c4_i32 = arith.constant 4 : i32
    %246 = vector.broadcast %c4_i32 : i32 to vector<2x1xi32>
    %247 = arith.cmpi sgt, %74, %246 : vector<2x1xi32>
    %248 = arith.extui %247 : vector<2x1xi1> to vector<2x1xi32>
    %249 = arith.sitofp %248 : vector<2x1xi32> to vector<2x1xf32>
    %250 = vector.broadcast %249 : vector<2x1xf32> to vector<2x32xf32>
    %251 = arith.mulf %250, %245 : vector<2x32xf32>
    %cst_76 = arith.constant 1.000000e+00 : f32
    %252 = vector.broadcast %cst_76 : f32 to vector<2x1xf32>
    %253 = arith.subf %252, %249 : vector<2x1xf32>
    %254 = vector.broadcast %253 : vector<2x1xf32> to vector<2x32xf32>
    %255 = arith.mulf %254, %218 : vector<2x32xf32>
    %256 = arith.addf %251, %255 : vector<2x32xf32>
    %257 = vector.broadcast %249 : vector<2x1xf32> to vector<2x32xf32>
    %258 = arith.mulf %257, %243 : vector<2x32xf32>
    %cst_77 = arith.constant 1.000000e+00 : f32
    %259 = vector.broadcast %cst_77 : f32 to vector<2x1xf32>
    %260 = arith.subf %259, %249 : vector<2x1xf32>
    %261 = vector.broadcast %260 : vector<2x1xf32> to vector<2x32xf32>
    %262 = arith.mulf %261, %225 : vector<2x32xf32>
    %263 = arith.addf %258, %262 : vector<2x32xf32>
    %264 = vector.broadcast %249 : vector<2x1xf32> to vector<2x32xf32>
    %265 = arith.mulf %264, %245 : vector<2x32xf32>
    %266 = vector.extract_strided_slice %71 {offsets = [10, 0], sizes = [2, 128], strides = [1, 1]} : vector<16x128xf32> to vector<2x128xf32>
    %cst_78 = arith.constant dense<0.000000e+00> : vector<2x128xf32>
    %267 = tpu.matmul %256, %75, %cst_78 {dimension_numbers = #tpu.dot_dimension_numbers<[1], [0], [0], [1], [0, 0, 1, 1], [], []>} : vector<2x32xf32>, vector<32x128xf32>, vector<2x128xf32> -> vector<2x128xf32>
    %268 = arith.addf %266, %267 : vector<2x128xf32>
    %269 = arith.negf %268 : vector<2x128xf32>
    %270 = math.exp %269 : vector<2x128xf32>
    %cst_79 = arith.constant 1.000000e+00 : f32
    %271 = vector.broadcast %cst_79 : f32 to vector<2x128xf32>
    %272 = arith.addf %271, %270 : vector<2x128xf32>
    %273 = arith.divf %271, %272 : vector<2x128xf32>
    %274 = math.tanh %268 : vector<2x128xf32>
    %275 = vector.extract_strided_slice %273 {offsets = [0, 0], sizes = [2, 32], strides = [1, 1]} : vector<2x128xf32> to vector<2x32xf32>
    %276 = vector.extract_strided_slice %273 {offsets = [0, 32], sizes = [2, 32], strides = [1, 1]} : vector<2x128xf32> to vector<2x32xf32>
    %277 = vector.extract_strided_slice %273 {offsets = [0, 64], sizes = [2, 32], strides = [1, 1]} : vector<2x128xf32> to vector<2x32xf32>
    %278 = vector.extract_strided_slice %274 {offsets = [0, 96], sizes = [2, 32], strides = [1, 1]} : vector<2x128xf32> to vector<2x32xf32>
    %279 = arith.mulf %276, %263 : vector<2x32xf32>
    %280 = arith.mulf %275, %278 : vector<2x32xf32>
    %281 = arith.addf %279, %280 : vector<2x32xf32>
    %282 = math.tanh %281 : vector<2x32xf32>
    %283 = arith.mulf %277, %282 : vector<2x32xf32>
    %c5_i32 = arith.constant 5 : i32
    %284 = vector.broadcast %c5_i32 : i32 to vector<2x1xi32>
    %285 = arith.cmpi sgt, %74, %284 : vector<2x1xi32>
    %286 = arith.extui %285 : vector<2x1xi1> to vector<2x1xi32>
    %287 = arith.sitofp %286 : vector<2x1xi32> to vector<2x1xf32>
    %288 = vector.broadcast %287 : vector<2x1xf32> to vector<2x32xf32>
    %289 = arith.mulf %288, %283 : vector<2x32xf32>
    %cst_80 = arith.constant 1.000000e+00 : f32
    %290 = vector.broadcast %cst_80 : f32 to vector<2x1xf32>
    %291 = arith.subf %290, %287 : vector<2x1xf32>
    %292 = vector.broadcast %291 : vector<2x1xf32> to vector<2x32xf32>
    %293 = arith.mulf %292, %256 : vector<2x32xf32>
    %294 = arith.addf %289, %293 : vector<2x32xf32>
    %295 = vector.broadcast %287 : vector<2x1xf32> to vector<2x32xf32>
    %296 = arith.mulf %295, %281 : vector<2x32xf32>
    %cst_81 = arith.constant 1.000000e+00 : f32
    %297 = vector.broadcast %cst_81 : f32 to vector<2x1xf32>
    %298 = arith.subf %297, %287 : vector<2x1xf32>
    %299 = vector.broadcast %298 : vector<2x1xf32> to vector<2x32xf32>
    %300 = arith.mulf %299, %263 : vector<2x32xf32>
    %301 = arith.addf %296, %300 : vector<2x32xf32>
    %302 = vector.broadcast %287 : vector<2x1xf32> to vector<2x32xf32>
    %303 = arith.mulf %302, %283 : vector<2x32xf32>
    %304 = vector.extract_strided_slice %71 {offsets = [12, 0], sizes = [2, 128], strides = [1, 1]} : vector<16x128xf32> to vector<2x128xf32>
    %cst_82 = arith.constant dense<0.000000e+00> : vector<2x128xf32>
    %305 = tpu.matmul %294, %75, %cst_82 {dimension_numbers = #tpu.dot_dimension_numbers<[1], [0], [0], [1], [0, 0, 1, 1], [], []>} : vector<2x32xf32>, vector<32x128xf32>, vector<2x128xf32> -> vector<2x128xf32>
    %306 = arith.addf %304, %305 : vector<2x128xf32>
    %307 = arith.negf %306 : vector<2x128xf32>
    %308 = math.exp %307 : vector<2x128xf32>
    %cst_83 = arith.constant 1.000000e+00 : f32
    %309 = vector.broadcast %cst_83 : f32 to vector<2x128xf32>
    %310 = arith.addf %309, %308 : vector<2x128xf32>
    %311 = arith.divf %309, %310 : vector<2x128xf32>
    %312 = math.tanh %306 : vector<2x128xf32>
    %313 = vector.extract_strided_slice %311 {offsets = [0, 0], sizes = [2, 32], strides = [1, 1]} : vector<2x128xf32> to vector<2x32xf32>
    %314 = vector.extract_strided_slice %311 {offsets = [0, 32], sizes = [2, 32], strides = [1, 1]} : vector<2x128xf32> to vector<2x32xf32>
    %315 = vector.extract_strided_slice %311 {offsets = [0, 64], sizes = [2, 32], strides = [1, 1]} : vector<2x128xf32> to vector<2x32xf32>
    %316 = vector.extract_strided_slice %312 {offsets = [0, 96], sizes = [2, 32], strides = [1, 1]} : vector<2x128xf32> to vector<2x32xf32>
    %317 = arith.mulf %314, %301 : vector<2x32xf32>
    %318 = arith.mulf %313, %316 : vector<2x32xf32>
    %319 = arith.addf %317, %318 : vector<2x32xf32>
    %320 = math.tanh %319 : vector<2x32xf32>
    %321 = arith.mulf %315, %320 : vector<2x32xf32>
    %c6_i32 = arith.constant 6 : i32
    %322 = vector.broadcast %c6_i32 : i32 to vector<2x1xi32>
    %323 = arith.cmpi sgt, %74, %322 : vector<2x1xi32>
    %324 = arith.extui %323 : vector<2x1xi1> to vector<2x1xi32>
    %325 = arith.sitofp %324 : vector<2x1xi32> to vector<2x1xf32>
    %326 = vector.broadcast %325 : vector<2x1xf32> to vector<2x32xf32>
    %327 = arith.mulf %326, %321 : vector<2x32xf32>
    %cst_84 = arith.constant 1.000000e+00 : f32
    %328 = vector.broadcast %cst_84 : f32 to vector<2x1xf32>
    %329 = arith.subf %328, %325 : vector<2x1xf32>
    %330 = vector.broadcast %329 : vector<2x1xf32> to vector<2x32xf32>
    %331 = arith.mulf %330, %294 : vector<2x32xf32>
    %332 = arith.addf %327, %331 : vector<2x32xf32>
    %333 = vector.broadcast %325 : vector<2x1xf32> to vector<2x32xf32>
    %334 = arith.mulf %333, %319 : vector<2x32xf32>
    %cst_85 = arith.constant 1.000000e+00 : f32
    %335 = vector.broadcast %cst_85 : f32 to vector<2x1xf32>
    %336 = arith.subf %335, %325 : vector<2x1xf32>
    %337 = vector.broadcast %336 : vector<2x1xf32> to vector<2x32xf32>
    %338 = arith.mulf %337, %301 : vector<2x32xf32>
    %339 = arith.addf %334, %338 : vector<2x32xf32>
    %340 = vector.broadcast %325 : vector<2x1xf32> to vector<2x32xf32>
    %341 = arith.mulf %340, %321 : vector<2x32xf32>
    %342 = vector.extract_strided_slice %71 {offsets = [14, 0], sizes = [2, 128], strides = [1, 1]} : vector<16x128xf32> to vector<2x128xf32>
    %cst_86 = arith.constant dense<0.000000e+00> : vector<2x128xf32>
    %343 = tpu.matmul %332, %75, %cst_86 {dimension_numbers = #tpu.dot_dimension_numbers<[1], [0], [0], [1], [0, 0, 1, 1], [], []>} : vector<2x32xf32>, vector<32x128xf32>, vector<2x128xf32> -> vector<2x128xf32>
    %344 = arith.addf %342, %343 : vector<2x128xf32>
    %345 = arith.negf %344 : vector<2x128xf32>
    %346 = math.exp %345 : vector<2x128xf32>
    %cst_87 = arith.constant 1.000000e+00 : f32
    %347 = vector.broadcast %cst_87 : f32 to vector<2x128xf32>
    %348 = arith.addf %347, %346 : vector<2x128xf32>
    %349 = arith.divf %347, %348 : vector<2x128xf32>
    %350 = math.tanh %344 : vector<2x128xf32>
    %351 = vector.extract_strided_slice %349 {offsets = [0, 0], sizes = [2, 32], strides = [1, 1]} : vector<2x128xf32> to vector<2x32xf32>
    %352 = vector.extract_strided_slice %349 {offsets = [0, 32], sizes = [2, 32], strides = [1, 1]} : vector<2x128xf32> to vector<2x32xf32>
    %353 = vector.extract_strided_slice %349 {offsets = [0, 64], sizes = [2, 32], strides = [1, 1]} : vector<2x128xf32> to vector<2x32xf32>
    %354 = vector.extract_strided_slice %350 {offsets = [0, 96], sizes = [2, 32], strides = [1, 1]} : vector<2x128xf32> to vector<2x32xf32>
    %355 = arith.mulf %352, %339 : vector<2x32xf32>
    %356 = arith.mulf %351, %354 : vector<2x32xf32>
    %357 = arith.addf %355, %356 : vector<2x32xf32>
    %358 = math.tanh %357 : vector<2x32xf32>
    %359 = arith.mulf %353, %358 : vector<2x32xf32>
    %c7_i32 = arith.constant 7 : i32
    %360 = vector.broadcast %c7_i32 : i32 to vector<2x1xi32>
    %361 = arith.cmpi sgt, %74, %360 : vector<2x1xi32>
    %362 = arith.extui %361 : vector<2x1xi1> to vector<2x1xi32>
    %363 = arith.sitofp %362 : vector<2x1xi32> to vector<2x1xf32>
    %364 = vector.broadcast %363 : vector<2x1xf32> to vector<2x32xf32>
    %365 = arith.mulf %364, %359 : vector<2x32xf32>
    %cst_88 = arith.constant 1.000000e+00 : f32
    %366 = vector.broadcast %cst_88 : f32 to vector<2x1xf32>
    %367 = arith.subf %366, %363 : vector<2x1xf32>
    %368 = vector.broadcast %367 : vector<2x1xf32> to vector<2x32xf32>
    %369 = arith.mulf %368, %332 : vector<2x32xf32>
    %370 = arith.addf %365, %369 : vector<2x32xf32>
    %371 = vector.broadcast %363 : vector<2x1xf32> to vector<2x32xf32>
    %372 = arith.mulf %371, %357 : vector<2x32xf32>
    %cst_89 = arith.constant 1.000000e+00 : f32
    %373 = vector.broadcast %cst_89 : f32 to vector<2x1xf32>
    %374 = arith.subf %373, %363 : vector<2x1xf32>
    %375 = vector.broadcast %374 : vector<2x1xf32> to vector<2x32xf32>
    %376 = arith.mulf %375, %339 : vector<2x32xf32>
    %377 = arith.addf %372, %376 : vector<2x32xf32>
    %378 = vector.broadcast %363 : vector<2x1xf32> to vector<2x32xf32>
    %379 = arith.mulf %378, %359 : vector<2x32xf32>
    %380 = tpu.concatenate %113, %151, %189, %227, %265, %303, %341, %379 in 1 : vector<2x32xf32>, vector<2x32xf32>, vector<2x32xf32>, vector<2x32xf32>, vector<2x32xf32>, vector<2x32xf32>, vector<2x32xf32>, vector<2x32xf32> -> vector<2x256xf32>
    %c0_90 = arith.constant 0 : index
    %c0_91 = arith.constant 0 : index
    %381 = vector.load %arg11[%c0_90, %c0_91] : memref<2x256xf32, #tpu.memory_space<vmem>>, vector<2x256xf32>
    tpu.vector_store %arg11[%c0_90, %c0_91], %380 {strides = array<i32>} : memref<2x256xf32, #tpu.memory_space<vmem>>, vector<2x256xf32>,
    %c0_92 = arith.constant 0 : index
    %c0_93 = arith.constant 0 : index
    %382 = vector.load %arg12[%c0_92, %c0_93] : memref<2x32xf32, #tpu.memory_space<vmem>>, vector<2x32xf32>
    tpu.vector_store %arg12[%c0_92, %c0_93], %370 {strides = array<i32>} : memref<2x32xf32, #tpu.memory_space<vmem>>, vector<2x32xf32>,
    %c0_94 = arith.constant 0 : index
    %c0_95 = arith.constant 0 : index
    %383 = vector.load %arg13[%c0_94, %c0_95] : memref<2x32xf32, #tpu.memory_space<vmem>>, vector<2x32xf32>
    tpu.vector_store %arg13[%c0_94, %c0_95], %377 {strides = array<i32>} : memref<2x32xf32, #tpu.memory_space<vmem>>, vector<2x32xf32>,
    return
  }
}

</mosaic_0001>

<llo_original>
// kernel: full_model_body_motion_forward.1
$region0: #{full_model_body_motion_forward.1}
  #allocation0 [shape = 'u32[]', space=smem, size = 0x4, offset = 0x4, fixed_abs, tag = 'smem constant byte address 0x4 - core index']
  #allocation1 [shape = 'u32[144,128]{1,0:T(1,128)}', space=vmem, size = 0x12000, scoped, tag = 'internal scratch']
  %s0 = inlined_call_operand.vmem [shape: bf16[2,144,72], index: 0, kind: input, shape index: {}]
  %s1 = inlined_call_operand.vmem [shape: bf16[3,72,64], index: 1, kind: input, shape index: {}]
  %s2 = inlined_call_operand.vmem [shape: f32[1,64], index: 2, kind: input, shape index: {}]
  %s3 = inlined_call_operand.vmem [shape: bf16[8,64,128], index: 3, kind: input, shape index: {}]
  %s4 = inlined_call_operand.vmem [shape: f32[1,128], index: 4, kind: input, shape index: {}]
  %s5 = inlined_call_operand.vmem [shape: f32[1,128], index: 5, kind: input, shape index: {}]
  %s6 = inlined_call_operand.vmem [shape: f32[32,128], index: 6, kind: input, shape index: {}]
  %s7 = inlined_call_operand.vmem [shape: f32[16,1], index: 7, kind: input, shape index: {}]
  %s8 = inlined_call_operand.vmem [shape: s32[2,1], index: 8, kind: input, shape index: {}]
  %s9 = inlined_call_operand.vmem [shape: f32[2,32], index: 9, kind: input, shape index: {}, may-alias: {9,10}]
  %s10 = inlined_call_operand.vmem [shape: f32[2,32], index: 10, kind: input, shape index: {}, may-alias: {9,10}]
  %s11 = inlined_call_operand.vmem [shape: f32[2,256], index: 11, kind: output, shape index: {0}]
  %s12 = inlined_call_operand.hbm [shape: f32[2,32], index: 12, kind: output, shape index: {1}]
  %s13 = inlined_call_operand.hbm [shape: f32[2,32], index: 13, kind: output, shape index: {2}]
  %14 = xla_tuple %s11, %s12, %s13
  %s15 = sld [smem:[#allocation0]]
  $region70: #{full_model_body_motion_forward.1} parent=0
    _
  %s17 = ssub.s32 1, %s15
  %s18 = scalar_select 0, %s17, %s15
  $region1: #{full_model_body_motion_forward.1} parent=0
    #allocation2 [shape = 'u8[1024]{0}', space=vmem, size = 0x400, scoped, tag = 'output window, operand 1, single buffered']
    #allocation3 [shape = 's32[1]{0}', space=sflag, size = 0x4, scoped, tag = 'scoped memory for full_model_body_motion_forward.1']
    #allocation4 [shape = 'u8[1024]{0}', space=vmem, size = 0x400, scoped, tag = 'output window, operand 2, single buffered']
    #allocation5 [shape = 's32[1]{0}', space=sflag, size = 0x4, scoped, tag = 'scoped memory for full_model_body_motion_forward.1']
    %19 = vsyncpa [#allocation3], 0
    %20 = vsyncpa [#allocation5], 0
    // Predicated region
    $region2: #{full_model_body_motion_forward.1} parent=1 // pred_check
      _
    $region3: #{full_model_body_motion_forward.1} parent=1 // pred_check_branch
      %22 = sbr.rel (0) target = $region5
    $region4: #{full_model_body_motion_forward.1} parent=1 // pred_region
      _
    $region5: #{full_model_body_motion_forward.1} parent=1 // pred_fallthru
      _
    // Predicated region
    $region6: #{full_model_body_motion_forward.1} parent=1 // pred_check
      _
    $region7: #{full_model_body_motion_forward.1} parent=1 // pred_check_branch
      %24 = sbr.rel (0) target = $region9
    $region8: #{full_model_body_motion_forward.1} parent=1 // pred_region
      _
    $region9: #{full_model_body_motion_forward.1} parent=1 // pred_fallthru
      _
    // Predicated region
    $region10: #{full_model_body_motion_forward.1} parent=1 // pred_check
      _
    $region11: #{full_model_body_motion_forward.1} parent=1 // pred_check_branch
      %26 = sbr.rel (0) target = $region13
    $region12: #{full_model_body_motion_forward.1} parent=1 // pred_region
      _
    $region13: #{full_model_body_motion_forward.1} parent=1 // pred_fallthru
      _
    // Predicated region
    $region14: #{full_model_body_motion_forward.1} parent=1 // pred_check
      _
    $region15: #{full_model_body_motion_forward.1} parent=1 // pred_check_branch
      %28 = sbr.rel (0) target = $region17
    $region16: #{full_model_body_motion_forward.1} parent=1 // pred_region
      _
    $region17: #{full_model_body_motion_forward.1} parent=1 // pred_fallthru
      _
    // Predicated region
    $region18: #{full_model_body_motion_forward.1} parent=1 // pred_check
      _
    $region19: #{full_model_body_motion_forward.1} parent=1 // pred_check_branch
      %30 = sbr.rel (0) target = $region21
    $region20: #{full_model_body_motion_forward.1} parent=1 // pred_region
      _
    $region21: #{full_model_body_motion_forward.1} parent=1 // pred_fallthru
      _
    // Predicated region
    $region22: #{full_model_body_motion_forward.1} parent=1 // pred_check
      _
    $region23: #{full_model_body_motion_forward.1} parent=1 // pred_check_branch
      %32 = sbr.rel (0) target = $region25
    $region24: #{full_model_body_motion_forward.1} parent=1 // pred_region
      _
    $region25: #{full_model_body_motion_forward.1} parent=1 // pred_fallthru
      _
    // Predicated region
    $region26: #{full_model_body_motion_forward.1} parent=1 // pred_check
      _
    $region27: #{full_model_body_motion_forward.1} parent=1 // pred_check_branch
      %34 = sbr.rel (0) target = $region29
    $region28: #{full_model_body_motion_forward.1} parent=1 // pred_region
      _
    $region29: #{full_model_body_motion_forward.1} parent=1 // pred_fallthru
      _
    // Predicated region
    $region30: #{full_model_body_motion_forward.1} parent=1 // pred_check
      _
    $region31: #{full_model_body_motion_forward.1} parent=1 // pred_check_branch
      %36 = sbr.rel (0) target = $region33
    $region32: #{full_model_body_motion_forward.1} parent=1 // pred_region
      _
    $region33: #{full_model_body_motion_forward.1} parent=1 // pred_fallthru
      _
    // Predicated region
    $region34: #{full_model_body_motion_forward.1} parent=1 // pred_check
      _
    $region35: #{full_model_body_motion_forward.1} parent=1 // pred_check_branch
      %38 = sbr.rel (0) target = $region37
    $region36: #{full_model_body_motion_forward.1} parent=1 // pred_region
      _
    $region37: #{full_model_body_motion_forward.1} parent=1 // pred_fallthru
      _
    // Predicated region
    $region38: #{full_model_body_motion_forward.1} parent=1 // pred_check
      _
    $region39: #{full_model_body_motion_forward.1} parent=1 // pred_check_branch
      %40 = sbr.rel (0) target = $region41
    $region40: #{full_model_body_motion_forward.1} parent=1 // pred_region
      _
    $region41: #{full_model_body_motion_forward.1} parent=1 // pred_fallthru
      _
    // Predicated region
    $region42: #{full_model_body_motion_forward.1} parent=1 // pred_check
      _
    $region43: #{full_model_body_motion_forward.1} parent=1 // pred_check_branch
      %42 = sbr.rel (0) target = $region45
    $region44: #{full_model_body_motion_forward.1} parent=1 // pred_region
      _
    $region45: #{full_model_body_motion_forward.1} parent=1 // pred_fallthru
      _
    %v44 = vld [vmem:[%s0] sm:$0xf]
    %v45 = vld [vmem:[%s0 + $0x4] sm:$0xf]
    %v46 = vld [vmem:[%s0 + $0x8] sm:$0xf]
    %v47 = vld [vmem:[%s0 + $0xc] sm:$0xf]
    %v48 = vld [vmem:[%s0 + $0x10] sm:$0xf]
    %v49 = vld [vmem:[%s0 + $0x14] sm:$0xf]
    %v50 = vld [vmem:[%s0 + $0x18] sm:$0xf]
    %v51 = vld [vmem:[%s0 + $0x1c] sm:$0xf]
    %v52 = vld [vmem:[%s0 + $0x20] sm:$0xf]
    %v53 = vld [vmem:[%s0 + $0x24] sm:$0xf]
    %v54 = vld [vmem:[%s0 + $0x28] sm:$0xf]
    %v55 = vld [vmem:[%s0 + $0x2c] sm:$0xf]
    %v56 = vld [vmem:[%s0 + $0x30] sm:$0xf]
    %v57 = vld [vmem:[%s0 + $0x34] sm:$0xf]
    %v58 = vld [vmem:[%s0 + $0x38] sm:$0xf]
    %v59 = vld [vmem:[%s0 + $0x3c] sm:$0xf]
    %v60 = vld [vmem:[%s0 + $0x40] sm:$0xf]
    %v61 = vld [vmem:[%s0 + $0x44] sm:$0xf]
    %s62 = scalar_lea.vmem %s0, 72
    %v63 = vld [vmem:[%s62] sm:$0xf]
    %v64 = vld [vmem:[%s62 + $0x4] sm:$0xf]
    %v65 = vld [vmem:[%s62 + $0x8] sm:$0xf]
    %v66 = vld [vmem:[%s62 + $0xc] sm:$0xf]
    %v67 = vld [vmem:[%s62 + $0x10] sm:$0xf]
    %v68 = vld [vmem:[%s62 + $0x14] sm:$0xf]
    %v69 = vld [vmem:[%s62 + $0x18] sm:$0xf]
    %v70 = vld [vmem:[%s62 + $0x1c] sm:$0xf]
    %v71 = vld [vmem:[%s62 + $0x20] sm:$0xf]
    %v72 = vld [vmem:[%s62 + $0x24] sm:$0xf]
    %v73 = vld [vmem:[%s62 + $0x28] sm:$0xf]
    %v74 = vld [vmem:[%s62 + $0x2c] sm:$0xf]
    %v75 = vld [vmem:[%s62 + $0x30] sm:$0xf]
    %v76 = vld [vmem:[%s62 + $0x34] sm:$0xf]
    %v77 = vld [vmem:[%s62 + $0x38] sm:$0xf]
    %v78 = vld [vmem:[%s62 + $0x3c] sm:$0xf]
    %v79 = vld [vmem:[%s1] sm:$0xf]
    %v80 = vld [vmem:[%s1 + $0x4] sm:$0xf]
    %v81 = vld [vmem:[%s1 + $0x8] sm:$0xf]
    %v82 = vld [vmem:[%s1 + $0xc] sm:$0xf]
    %v83 = vld [vmem:[%s1 + $0x10] sm:$0xf]
    %v84 = vld [vmem:[%s1 + $0x14] sm:$0xf]
    %v85 = vld [vmem:[%s1 + $0x18] sm:$0xf]
    %v86 = vld [vmem:[%s1 + $0x1c] sm:$0xf]
    %v87 = vld [vmem:[%s1 + $0x20] sm:$0xf]
    %s88 = scalar_lea.vmem %s1, 36
    %v89 = vld [vmem:[%s88] sm:$0xf]
    %v90 = vld [vmem:[%s88 + $0x4] sm:$0xf]
    %v91 = vld [vmem:[%s88 + $0x8] sm:$0xf]
    %v92 = vld [vmem:[%s88 + $0xc] sm:$0xf]
    %v93 = vld [vmem:[%s88 + $0x10] sm:$0xf]
    %v94 = vld [vmem:[%s88 + $0x14] sm:$0xf]
    %v95 = vld [vmem:[%s88 + $0x18] sm:$0xf]
    %v96 = vld [vmem:[%s88 + $0x1c] sm:$0xf]
    %v97 = vld [vmem:[%s88 + $0x20] sm:$0xf]
    %v114 = vunpack.c.l.b16 %v63
    %v115 = vunpack.c.l.b16 %v64
    %v116 = vunpack.c.l.b16 %v65
    %v117 = vunpack.c.l.b16 %v66
    %v118 = vunpack.c.l.b16 %v67
    %v119 = vunpack.c.l.b16 %v68
    %v120 = vunpack.c.l.b16 %v69
    %v121 = vunpack.c.l.b16 %v70
    %v122 = vunpack.c.l.b16 %v71
    %v123 = vunpack.c.l.b16 %v72
    %v124 = vunpack.c.l.b16 %v73
    %v125 = vunpack.c.l.b16 %v74
    %v126 = vunpack.c.l.b16 %v75
    %v127 = vunpack.c.l.b16 %v76
    %v128 = vunpack.c.l.b16 %v77
    %v129 = vunpack.c.l.b16 %v78
    %v130 = vpack.c.b16 %v115, %v114
    %v131 = vpack.c.b16 %v117, %v116
    %v132 = vpack.c.b16 %v119, %v118
    %v133 = vpack.c.b16 %v121, %v120
    %v134 = vpack.c.b16 %v123, %v122
    %v135 = vpack.c.b16 %v125, %v124
    %v136 = vpack.c.b16 %v127, %v126
    %v137 = vpack.c.b16 %v129, %v128
    %v147 = vunpack.c.l.b16 %v89
    %v148 = vunpack.c.l.b16 %v90
    %v149 = vunpack.c.l.b16 %v91
    %v150 = vunpack.c.l.b16 %v92
    %v151 = vunpack.c.l.b16 %v93
    %v152 = vunpack.c.l.b16 %v94
    %v153 = vunpack.c.l.b16 %v95
    %v154 = vunpack.c.l.b16 %v96
    %v155 = vunpack.c.l.b16 %v97
    %v156 = vpack.c.b16 %v148, %v147
    %v157 = vpack.c.b16 %v150, %v149
    %v158 = vpack.c.b16 %v152, %v151
    %v159 = vpack.c.b16 %v154, %v153
    %v160 = vpack.c.b16 %v155, %v155
    %vm165 = vcmask 588800
    %v167 = vsel %vm165, %v130, 0
    %v170 = vsel %vm165, %v131, 0
    %v173 = vsel %vm165, %v132, 0
    %v176 = vsel %vm165, %v133, 0
    %v179 = vsel %vm165, %v134, 0
    %v182 = vsel %vm165, %v135, 0
    %v185 = vsel %vm165, %v136, 0
    %v188 = vsel %vm165, %v137, 0
    %vm190 = vcmask 1043456
    %v192 = vsel %vm190, %v160, 0
    %194 = vmatprep.subr.bf16.mxu0 0
    %195 = vmatpush1.bf16.msra.mxu0 %v156
    %196 = vmatprep.subr.bf16.mxu0 0
    %197 = vmatpush1.bf16.msra.mxu0 %v157
    %198 = vmatprep.subr.bf16.mxu0 0
    %199 = vmatpush1.bf16.msra.mxu0 %v158
    %200 = vmatprep.subr.bf16.mxu0 0
    %201 = vmatpush1.bf16.msra.mxu0 %v159
    %202 = vmatprep.subr.bf16.mxu0 0
    %203 = vmatpush1.bf16.msra.mxu0 %v192
    %204 = vmatprep.subr.bf16.mxu0 0
    %205 = vmatpush1.bf16.msra.mxu0 0
    %206 = vmatprep.subr.bf16.mxu0 0
    %207 = vmatpush1.bf16.msra.mxu0 0
    %208 = vmatprep.subr.bf16.mxu0 0
    %209 = vmatpush1.bf16.msra.mxu0 0
    %210 = vmatprep.subr.bf16.mxu0 0
    %211 = vmatpush1.bf16.msra.mxu0 0
    %212 = vmatprep.subr.bf16.mxu0 0
    %213 = vmatpush1.bf16.msra.mxu0 0
    %214 = vmatprep.subr.bf16.mxu0 0
    %215 = vmatpush1.bf16.msra.mxu0 0
    %216 = vmatprep.subr.bf16.mxu0 0
    %217 = vmatpush1.bf16.msra.mxu0 0
    %218 = vmatprep.subr.bf16.mxu0 0
    %219 = vmatpush1.bf16.msra.mxu0 0
    %220 = vmatprep.subr.bf16.mxu0 0
    %221 = vmatpush1.bf16.msra.mxu0 0
    %222 = vmatprep.subr.bf16.mxu0 0
    %223 = vmatpush1.bf16.msra.mxu0 0
    %224 = vmatprep.subr.bf16.mxu0 0
    %225 = vmatpush1.bf16.msra.mxu0 0
    %226 = vmatprep.mubr.bf16.mxu0 0
    %227 = vmatmul.mubr.bf16.gmra.mrb[0].mxu0 %v167
    %v228 = vpop.f32.mrb[0].mxu0
    %v229 = vadd.f32 0.0, %v228
    %v230 = vpop.f32.mrb[0].mxu0
    %v231 = vpop.f32.mrb[0].mxu0
    %v232 = vadd.f32 0.0, %v231
    %v233 = vpop.f32.mrb[0].mxu0
    %234 = vmatprep.mubr.bf16.mxu0 0
    %235 = vmatmul.mubr.bf16.gmra.mrb[0].mxu0 %v170
    %v236 = vpop.f32.mrb[0].mxu0
    %v237 = vadd.f32 0.0, %v236
    %v238 = vpop.f32.mrb[0].mxu0
    %v239 = vpop.f32.mrb[0].mxu0
    %v240 = vadd.f32 0.0, %v239
    %v241 = vpop.f32.mrb[0].mxu0
    %242 = vmatprep.mubr.bf16.mxu0 0
    %243 = vmatmul.mubr.bf16.gmra.mrb[0].mxu0 %v173
    %v244 = vpop.f32.mrb[0].mxu0
    %v245 = vadd.f32 0.0, %v244
    %v246 = vpop.f32.mrb[0].mxu0
    %v247 = vpop.f32.mrb[0].mxu0
    %v248 = vadd.f32 0.0, %v247
    %v249 = vpop.f32.mrb[0].mxu0
    %250 = vmatprep.mubr.bf16.mxu0 0
    %251 = vmatmul.mubr.bf16.gmra.mrb[0].mxu0 %v176
    %v252 = vpop.f32.mrb[0].mxu0
    %v253 = vadd.f32 0.0, %v252
    %v254 = vpop.f32.mrb[0].mxu0
    %v255 = vpop.f32.mrb[0].mxu0
    %v256 = vadd.f32 0.0, %v255
    %v257 = vpop.f32.mrb[0].mxu0
    %258 = vmatprep.mubr.bf16.mxu0 0
    %259 = vmatmul.mubr.bf16.gmra.mrb[0].mxu0 %v179
    %v260 = vpop.f32.mrb[0].mxu0
    %v261 = vadd.f32 0.0, %v260
    %v262 = vpop.f32.mrb[0].mxu0
    %v263 = vpop.f32.mrb[0].mxu0
    %v264 = vadd.f32 0.0, %v263
    %v265 = vpop.f32.mrb[0].mxu0
    %266 = vmatprep.mubr.bf16.mxu0 0
    %267 = vmatmul.mubr.bf16.gmra.mrb[0].mxu0 %v182
    %v268 = vpop.f32.mrb[0].mxu0
    %v269 = vadd.f32 0.0, %v268
    %v270 = vpop.f32.mrb[0].mxu0
    %v271 = vpop.f32.mrb[0].mxu0
    %v272 = vadd.f32 0.0, %v271
    %v273 = vpop.f32.mrb[0].mxu0
    %274 = vmatprep.mubr.bf16.mxu0 0
    %275 = vmatmul.mubr.bf16.gmra.mrb[0].mxu0 %v185
    %v276 = vpop.f32.mrb[0].mxu0
    %v277 = vadd.f32 0.0, %v276
    %v278 = vpop.f32.mrb[0].mxu0
    %v279 = vpop.f32.mrb[0].mxu0
    %v280 = vadd.f32 0.0, %v279
    %v281 = vpop.f32.mrb[0].mxu0
    %282 = vmatprep.mubr.bf16.mxu0 0
    %283 = vmatmul.mubr.bf16.gmra.mrb[0].mxu0 %v188
    %v284 = vpop.f32.mrb[0].mxu0
    %v285 = vadd.f32 0.0, %v284
    %v286 = vpop.f32.mrb[0].mxu0
    %v287 = vpop.f32.mrb[0].mxu0
    %v288 = vadd.f32 0.0, %v287
    %v289 = vpop.f32.mrb[0].mxu0
    %290 = vdwg.mxu0
    %v307 = vunpack.c.l.b16 %v44
    %v308 = vunpack.c.l.b16 %v45
    %v309 = vunpack.c.l.b16 %v46
    %v310 = vunpack.c.l.b16 %v47
    %v311 = vunpack.c.l.b16 %v48
    %v312 = vunpack.c.l.b16 %v49
    %v313 = vunpack.c.l.b16 %v50
    %v314 = vunpack.c.l.b16 %v51
    %v315 = vunpack.c.l.b16 %v52
    %v316 = vunpack.c.l.b16 %v53
    %v317 = vunpack.c.l.b16 %v54
    %v318 = vunpack.c.l.b16 %v55
    %v319 = vunpack.c.l.b16 %v56
    %v320 = vunpack.c.l.b16 %v57
    %v321 = vunpack.c.l.b16 %v58
    %v322 = vunpack.c.l.b16 %v59
    %v323 = vpack.c.b16 %v308, %v307
    %v324 = vpack.c.b16 %v310, %v309
    %v325 = vpack.c.b16 %v312, %v311
    %v326 = vpack.c.b16 %v314, %v313
    %v327 = vpack.c.b16 %v316, %v315
    %v328 = vpack.c.b16 %v318, %v317
    %v329 = vpack.c.b16 %v320, %v319
    %v330 = vpack.c.b16 %v322, %v321
    %v340 = vunpack.c.l.b16 %v79
    %v341 = vunpack.c.l.b16 %v80
    %v342 = vunpack.c.l.b16 %v81
    %v343 = vunpack.c.l.b16 %v82
    %v344 = vunpack.c.l.b16 %v83
    %v345 = vunpack.c.l.b16 %v84
    %v346 = vunpack.c.l.b16 %v85
    %v347 = vunpack.c.l.b16 %v86
    %v348 = vunpack.c.l.b16 %v87
    %v349 = vpack.c.b16 %v341, %v340
    %v350 = vpack.c.b16 %v343, %v342
    %v351 = vpack.c.b16 %v345, %v344
    %v352 = vpack.c.b16 %v347, %v346
    %v353 = vpack.c.b16 %v348, %v348
    %v359 = vsel %vm165, %v323, 0
    %v362 = vsel %vm165, %v324, 0
    %v365 = vsel %vm165, %v325, 0
    %v368 = vsel %vm165, %v326, 0
    %v371 = vsel %vm165, %v327, 0
    %v374 = vsel %vm165, %v328, 0
    %v377 = vsel %vm165, %v329, 0
    %v380 = vsel %vm165, %v330, 0
    %v383 = vsel %vm190, %v353, 0
    %385 = vmatprep.subr.bf16.mxu0 0
    %386 = vmatpush1.bf16.msra.mxu0 %v349
    %387 = vmatprep.subr.bf16.mxu0 0
    %388 = vmatpush1.bf16.msra.mxu0 %v350
    %389 = vmatprep.subr.bf16.mxu0 0
    %390 = vmatpush1.bf16.msra.mxu0 %v351
    %391 = vmatprep.subr.bf16.mxu0 0
    %392 = vmatpush1.bf16.msra.mxu0 %v352
    %393 = vmatprep.subr.bf16.mxu0 0
    %394 = vmatpush1.bf16.msra.mxu0 %v383
    %395 = vmatprep.subr.bf16.mxu0 0
    %396 = vmatpush1.bf16.msra.mxu0 0
    %397 = vmatprep.subr.bf16.mxu0 0
    %398 = vmatpush1.bf16.msra.mxu0 0
    %399 = vmatprep.subr.bf16.mxu0 0
    %400 = vmatpush1.bf16.msra.mxu0 0
    %401 = vmatprep.subr.bf16.mxu0 0
    %402 = vmatpush1.bf16.msra.mxu0 0
    %403 = vmatprep.subr.bf16.mxu0 0
    %404 = vmatpush1.bf16.msra.mxu0 0
    %405 = vmatprep.subr.bf16.mxu0 0
    %406 = vmatpush1.bf16.msra.mxu0 0
    %407 = vmatprep.subr.bf16.mxu0 0
    %408 = vmatpush1.bf16.msra.mxu0 0
    %409 = vmatprep.subr.bf16.mxu0 0
    %410 = vmatpush1.bf16.msra.mxu0 0
    %411 = vmatprep.subr.bf16.mxu0 0
    %412 = vmatpush1.bf16.msra.mxu0 0
    %413 = vmatprep.subr.bf16.mxu0 0
    %414 = vmatpush1.bf16.msra.mxu0 0
    %415 = vmatprep.subr.bf16.mxu0 0
    %416 = vmatpush1.bf16.msra.mxu0 0
    %417 = vmatprep.mubr.bf16.mxu0 0
    %418 = vmatmul.mubr.bf16.gmra.mrb[0].mxu0 %v359
    %v419 = vpop.f32.mrb[0].mxu0
    %v420 = vadd.f32 %v229, %v419
    %v421 = vpop.f32.mrb[0].mxu0
    %v422 = vpop.f32.mrb[0].mxu0
    %v423 = vadd.f32 %v232, %v422
    %v424 = vpop.f32.mrb[0].mxu0
    %425 = vmatprep.mubr.bf16.mxu0 0
    %426 = vmatmul.mubr.bf16.gmra.mrb[0].mxu0 %v362
    %v427 = vpop.f32.mrb[0].mxu0
    %v428 = vadd.f32 %v237, %v427
    %v429 = vpop.f32.mrb[0].mxu0
    %v430 = vpop.f32.mrb[0].mxu0
    %v431 = vadd.f32 %v240, %v430
    %v432 = vpop.f32.mrb[0].mxu0
    %433 = vmatprep.mubr.bf16.mxu0 0
    %434 = vmatmul.mubr.bf16.gmra.mrb[0].mxu0 %v365
    %v435 = vpop.f32.mrb[0].mxu0
    %v436 = vadd.f32 %v245, %v435
    %v437 = vpop.f32.mrb[0].mxu0
    %v438 = vpop.f32.mrb[0].mxu0
    %v439 = vadd.f32 %v248, %v438
    %v440 = vpop.f32.mrb[0].mxu0
    %441 = vmatprep.mubr.bf16.mxu0 0
    %442 = vmatmul.mubr.bf16.gmra.mrb[0].mxu0 %v368
    %v443 = vpop.f32.mrb[0].mxu0
    %v444 = vadd.f32 %v253, %v443
    %v445 = vpop.f32.mrb[0].mxu0
    %v446 = vpop.f32.mrb[0].mxu0
    %v447 = vadd.f32 %v256, %v446
    %v448 = vpop.f32.mrb[0].mxu0
    %449 = vmatprep.mubr.bf16.mxu0 0
    %450 = vmatmul.mubr.bf16.gmra.mrb[0].mxu0 %v371
    %v451 = vpop.f32.mrb[0].mxu0
    %v452 = vadd.f32 %v261, %v451
    %v453 = vpop.f32.mrb[0].mxu0
    %v454 = vpop.f32.mrb[0].mxu0
    %v455 = vadd.f32 %v264, %v454
    %v456 = vpop.f32.mrb[0].mxu0
    %457 = vmatprep.mubr.bf16.mxu0 0
    %458 = vmatmul.mubr.bf16.gmra.mrb[0].mxu0 %v374
    %v459 = vpop.f32.mrb[0].mxu0
    %v460 = vadd.f32 %v269, %v459
    %v461 = vpop.f32.mrb[0].mxu0
    %v462 = vpop.f32.mrb[0].mxu0
    %v463 = vadd.f32 %v272, %v462
    %v464 = vpop.f32.mrb[0].mxu0
    %465 = vmatprep.mubr.bf16.mxu0 0
    %466 = vmatmul.mubr.bf16.gmra.mrb[0].mxu0 %v377
    %v467 = vpop.f32.mrb[0].mxu0
    %v468 = vadd.f32 %v277, %v467
    %v469 = vpop.f32.mrb[0].mxu0
    %v470 = vpop.f32.mrb[0].mxu0
    %v471 = vadd.f32 %v280, %v470
    %v472 = vpop.f32.mrb[0].mxu0
    %473 = vmatprep.mubr.bf16.mxu0 0
    %474 = vmatmul.mubr.bf16.gmra.mrb[0].mxu0 %v380
    %v475 = vpop.f32.mrb[0].mxu0
    %v476 = vadd.f32 %v285, %v475
    %v477 = vpop.f32.mrb[0].mxu0
    %v478 = vpop.f32.mrb[0].mxu0
    %v479 = vadd.f32 %v288, %v478
    %v480 = vpop.f32.mrb[0].mxu0
    %481 = vdwg.mxu0
    %s482 = scalar_lea.vmem %s1, 72
    %v483 = vld [vmem:[%s482] sm:$0xf]
    %v484 = vld [vmem:[%s482 + $0x4] sm:$0xf]
    %v485 = vld [vmem:[%s482 + $0x8] sm:$0xf]
    %v486 = vld [vmem:[%s482 + $0xc] sm:$0xf]
    %v487 = vld [vmem:[%s482 + $0x10] sm:$0xf]
    %v488 = vld [vmem:[%s482 + $0x14] sm:$0xf]
    %v489 = vld [vmem:[%s482 + $0x18] sm:$0xf]
    %v490 = vld [vmem:[%s482 + $0x1c] sm:$0xf]
    %v491 = vld [vmem:[%s482 + $0x20] sm:$0xf]
    %v494 = vunpack.c.l.b16 %v60
    %v495 = vunpack.c.l.b16 %v61
    %v496 = vpack.c.b16 %v495, %v494
    %v506 = vunpack.c.l.b16 %v483
    %v507 = vunpack.c.l.b16 %v484
    %v508 = vunpack.c.l.b16 %v485
    %v509 = vunpack.c.l.b16 %v486
    %v510 = vunpack.c.l.b16 %v487
    %v511 = vunpack.c.l.b16 %v488
    %v512 = vunpack.c.l.b16 %v489
    %v513 = vunpack.c.l.b16 %v490
    %v514 = vunpack.c.l.b16 %v491
    %v515 = vpack.c.b16 %v507, %v506
    %v516 = vpack.c.b16 %v509, %v508
    %v517 = vpack.c.b16 %v511, %v510
    %v518 = vpack.c.b16 %v513, %v512
    %v519 = vpack.c.b16 %v514, %v514
    %v525 = vsel %vm165, %v496, 0
    %v528 = vsel %vm190, %v519, 0
    %530 = vmatprep.subr.bf16.mxu0 0
    %531 = vmatpush1.bf16.msra.mxu0 %v515
    %532 = vmatprep.subr.bf16.mxu0 0
    %533 = vmatpush1.bf16.msra.mxu0 %v516
    %534 = vmatprep.subr.bf16.mxu0 0
    %535 = vmatpush1.bf16.msra.mxu0 %v517
    %536 = vmatprep.subr.bf16.mxu0 0
    %537 = vmatpush1.bf16.msra.mxu0 %v518
    %538 = vmatprep.subr.bf16.mxu0 0
    %539 = vmatpush1.bf16.msra.mxu0 %v528
    %540 = vmatprep.subr.bf16.mxu0 0
    %541 = vmatpush1.bf16.msra.mxu0 0
    %542 = vmatprep.subr.bf16.mxu0 0
    %543 = vmatpush1.bf16.msra.mxu0 0
    %544 = vmatprep.subr.bf16.mxu0 0
    %545 = vmatpush1.bf16.msra.mxu0 0
    %546 = vmatprep.subr.bf16.mxu0 0
    %547 = vmatpush1.bf16.msra.mxu0 0
    %548 = vmatprep.subr.bf16.mxu0 0
    %549 = vmatpush1.bf16.msra.mxu0 0
    %550 = vmatprep.subr.bf16.mxu0 0
    %551 = vmatpush1.bf16.msra.mxu0 0
    %552 = vmatprep.subr.bf16.mxu0 0
    %553 = vmatpush1.bf16.msra.mxu0 0
    %554 = vmatprep.subr.bf16.mxu0 0
    %555 = vmatpush1.bf16.msra.mxu0 0
    %556 = vmatprep.subr.bf16.mxu0 0
    %557 = vmatpush1.bf16.msra.mxu0 0
    %558 = vmatprep.subr.bf16.mxu0 0
    %559 = vmatpush1.bf16.msra.mxu0 0
    %560 = vmatprep.subr.bf16.mxu0 0
    %561 = vmatpush1.bf16.msra.mxu0 0
    %562 = vmatprep.mubr.bf16.mxu0 0
    %563 = vmatmul.mubr.bf16.gmra.mrb[0].mxu0 %v362
    %v564 = vpop.f32.mrb[0].mxu0
    %v565 = vadd.f32 0.0, %v564
    %v566 = vpop.f32.mrb[0].mxu0
    %v567 = vpop.f32.mrb[0].mxu0
    %v568 = vadd.f32 0.0, %v567
    %v569 = vpop.f32.mrb[0].mxu0
    %570 = vmatprep.mubr.bf16.mxu0 0
    %571 = vmatmul.mubr.bf16.gmra.mrb[0].mxu0 %v365
    %v572 = vpop.f32.mrb[0].mxu0
    %v573 = vadd.f32 0.0, %v572
    %v574 = vpop.f32.mrb[0].mxu0
    %v575 = vpop.f32.mrb[0].mxu0
    %v576 = vadd.f32 0.0, %v575
    %v577 = vpop.f32.mrb[0].mxu0
    %578 = vmatprep.mubr.bf16.mxu0 0
    %579 = vmatmul.mubr.bf16.gmra.mrb[0].mxu0 %v368
    %v580 = vpop.f32.mrb[0].mxu0
    %v581 = vadd.f32 0.0, %v580
    %v582 = vpop.f32.mrb[0].mxu0
    %v583 = vpop.f32.mrb[0].mxu0
    %v584 = vadd.f32 0.0, %v583
    %v585 = vpop.f32.mrb[0].mxu0
    %586 = vmatprep.mubr.bf16.mxu0 0
    %587 = vmatmul.mubr.bf16.gmra.mrb[0].mxu0 %v371
    %v588 = vpop.f32.mrb[0].mxu0
    %v589 = vadd.f32 0.0, %v588
    %v590 = vpop.f32.mrb[0].mxu0
    %v591 = vpop.f32.mrb[0].mxu0
    %v592 = vadd.f32 0.0, %v591
    %v593 = vpop.f32.mrb[0].mxu0
    %594 = vmatprep.mubr.bf16.mxu0 0
    %595 = vmatmul.mubr.bf16.gmra.mrb[0].mxu0 %v374
    %v596 = vpop.f32.mrb[0].mxu0
    %v597 = vadd.f32 0.0, %v596
    %v598 = vpop.f32.mrb[0].mxu0
    %v599 = vpop.f32.mrb[0].mxu0
    %v600 = vadd.f32 0.0, %v599
    %v601 = vpop.f32.mrb[0].mxu0
    %602 = vmatprep.mubr.bf16.mxu0 0
    %603 = vmatmul.mubr.bf16.gmra.mrb[0].mxu0 %v377
    %v604 = vpop.f32.mrb[0].mxu0
    %v605 = vadd.f32 0.0, %v604
    %v606 = vpop.f32.mrb[0].mxu0
    %v607 = vpop.f32.mrb[0].mxu0
    %v608 = vadd.f32 0.0, %v607
    %v609 = vpop.f32.mrb[0].mxu0
    %610 = vmatprep.mubr.bf16.mxu0 0
    %611 = vmatmul.mubr.bf16.gmra.mrb[0].mxu0 %v380
    %v612 = vpop.f32.mrb[0].mxu0
    %v613 = vadd.f32 0.0, %v612
    %v614 = vpop.f32.mrb[0].mxu0
    %v615 = vpop.f32.mrb[0].mxu0
    %v616 = vadd.f32 0.0, %v615
    %v617 = vpop.f32.mrb[0].mxu0
    %618 = vmatprep.mubr.bf16.mxu0 0
    %619 = vmatmul.mubr.bf16.gmra.mrb[0].mxu0 %v525
    %v620 = vpop.f32.mrb[0].mxu0
    %v621 = vadd.f32 0.0, %v620
    %v622 = vpop.f32.mrb[0].mxu0
    %v623 = vpop.f32.mrb[0].mxu0
    %v624 = vadd.f32 0.0, %v623
    %v625 = vpop.f32.mrb[0].mxu0
    %626 = vdwg.mxu0
    %v627 = vadd.f32 %v420, %v565
    %v628 = vadd.f32 %v423, %v568
    %v629 = vadd.f32 %v428, %v573
    %v630 = vadd.f32 %v431, %v576
    %v631 = vadd.f32 %v436, %v581
    %v632 = vadd.f32 %v439, %v584
    %v633 = vadd.f32 %v444, %v589
    %v634 = vadd.f32 %v447, %v592
    %v635 = vadd.f32 %v452, %v597
    %v636 = vadd.f32 %v455, %v600
    %v637 = vadd.f32 %v460, %v605
    %v638 = vadd.f32 %v463, %v608
    %v639 = vadd.f32 %v468, %v613
    %v640 = vadd.f32 %v471, %v616
    %v641 = vadd.f32 %v476, %v621
    %v642 = vadd.f32 %v479, %v624
    %v643 = vld [vmem:[%s2] sm:$0x1]
    %v645 = vlaneseq
    %v646 = vshrl.u32 %v645, 7
    %v647 = vsub.s32 0, %v646
    %v648 = vrot.slane %v643, %v647
    %v650 = vadd.f32 %v627, %v648
    %v651 = vadd.f32 %v628, %v648
    %v652 = vadd.f32 %v629, %v648
    %v653 = vadd.f32 %v630, %v648
    %v654 = vadd.f32 %v631, %v648
    %v655 = vadd.f32 %v632, %v648
    %v656 = vadd.f32 %v633, %v648
    %v657 = vadd.f32 %v634, %v648
    %v658 = vadd.f32 %v635, %v648
    %v659 = vadd.f32 %v636, %v648
    %v660 = vadd.f32 %v637, %v648
    %v661 = vadd.f32 %v638, %v648
    %v662 = vadd.f32 %v639, %v648
    %v663 = vadd.f32 %v640, %v648
    %v664 = vadd.f32 %v641, %v648
    %v665 = vadd.f32 %v642, %v648
    %v666 = vmax.f32 %v650, 0.0
    %v667 = vmax.f32 %v651, 0.0
    %v668 = vmax.f32 %v652, 0.0
    %v669 = vmax.f32 %v653, 0.0
    %v670 = vmax.f32 %v654, 0.0
    %v671 = vmax.f32 %v655, 0.0
    %v672 = vmax.f32 %v656, 0.0
    %v673 = vmax.f32 %v657, 0.0
    %v674 = vmax.f32 %v658, 0.0
    %v675 = vmax.f32 %v659, 0.0
    %v676 = vmax.f32 %v660, 0.0
    %v677 = vmax.f32 %v661, 0.0
    %v678 = vmax.f32 %v662, 0.0
    %v679 = vmax.f32 %v663, 0.0
    %v680 = vmax.f32 %v664, 0.0
    %v681 = vmax.f32 %v665, 0.0
    %v682 = vpack.c.bf16 %v667, %v666
    %v683 = vpack.c.bf16 %v669, %v668
    %v684 = vpack.c.bf16 %v671, %v670
    %v685 = vpack.c.bf16 %v673, %v672
    %v686 = vpack.c.bf16 %v675, %v674
    %v687 = vpack.c.bf16 %v677, %v676
    %v688 = vpack.c.bf16 %v679, %v678
    %v689 = vpack.c.bf16 %v681, %v680
    %v690 = vld [vmem:[%s7] sm:$0xff]
    %v691 = vld [vmem:[%s7 + $0x8] sm:$0xff]
    %v692 = vld [vmem:[%s4] sm:$0x1]
    %694 = vset.pattern.permute.xlu0 0
    %695 = vperm.xlu0 %694, %v690
    %v696 = vpop.permute.xlu0 %695
    %699 = vset.pattern.permute.xlu0 0
    %700 = vperm.xlu0 %699, %v691
    %v701 = vpop.permute.xlu0 %700
    %v704 = vlaneseq
    %v705 = vshrl.u32 %v704, 7
    %v706 = vsub.s32 0, %v705
    %v707 = vrot.slane %v692, %v706
    %v709 = vmul.f32 %v696, %v707
    %v710 = vmul.f32 %v701, %v707
    %v711 = vld [vmem:[%s5] sm:$0x1]
    %v713 = vlaneseq
    %v714 = vshrl.u32 %v713, 7
    %v715 = vsub.s32 0, %v714
    %v716 = vrot.slane %v711, %v715
    %v718 = vadd.f32 %v709, %v716
    %v719 = vadd.f32 %v710, %v716
    %v720 = vld [vmem:[%s3] sm:$0xf]
    %v721 = vld [vmem:[%s3 + $0x4] sm:$0xf]
    %v722 = vld [vmem:[%s3 + $0x8] sm:$0xf]
    %v723 = vld [vmem:[%s3 + $0xc] sm:$0xf]
    %v724 = vld [vmem:[%s3 + $0x10] sm:$0xf]
    %v725 = vld [vmem:[%s3 + $0x14] sm:$0xf]
    %v726 = vld [vmem:[%s3 + $0x18] sm:$0xf]
    %v727 = vld [vmem:[%s3 + $0x1c] sm:$0xf]
    %v736 = vunpack.c.l.b16 %v720
    %v737 = vunpack.c.l.b16 %v721
    %v738 = vunpack.c.l.b16 %v722
    %v739 = vunpack.c.l.b16 %v723
    %v740 = vunpack.c.l.b16 %v724
    %v741 = vunpack.c.l.b16 %v725
    %v742 = vunpack.c.l.b16 %v726
    %v743 = vunpack.c.l.b16 %v727
    %v744 = vpack.c.b16 %v737, %v736
    %v745 = vpack.c.b16 %v739, %v738
    %v746 = vpack.c.b16 %v741, %v740
    %v747 = vpack.c.b16 %v743, %v742
    %vm752 = vcmask 523264
    %v754 = vsel %vm752, %v682, 0
    %756 = vmatprep.subr.bf16.mxu0 0
    %757 = vmatpush1.bf16.msra.mxu0 %v744
    %758 = vmatprep.subr.bf16.mxu0 0
    %759 = vmatpush1.bf16.msra.mxu0 %v745
    %760 = vmatprep.subr.bf16.mxu0 0
    %761 = vmatpush1.bf16.msra.mxu0 %v746
    %762 = vmatprep.subr.bf16.mxu0 0
    %763 = vmatpush1.bf16.msra.mxu0 %v747
    %764 = vmatprep.subr.bf16.mxu0 0
    %765 = vmatpush1.bf16.msra.mxu0 0
    %766 = vmatprep.subr.bf16.mxu0 0
    %767 = vmatpush1.bf16.msra.mxu0 0
    %768 = vmatprep.subr.bf16.mxu0 0
    %769 = vmatpush1.bf16.msra.mxu0 0
    %770 = vmatprep.subr.bf16.mxu0 0
    %771 = vmatpush1.bf16.msra.mxu0 0
    %772 = vmatprep.subr.bf16.mxu0 0
    %773 = vmatpush1.bf16.msra.mxu0 0
    %774 = vmatprep.subr.bf16.mxu0 0
    %775 = vmatpush1.bf16.msra.mxu0 0
    %776 = vmatprep.subr.bf16.mxu0 0
    %777 = vmatpush1.bf16.msra.mxu0 0
    %778 = vmatprep.subr.bf16.mxu0 0
    %779 = vmatpush1.bf16.msra.mxu0 0
    %780 = vmatprep.subr.bf16.mxu0 0
    %781 = vmatpush1.bf16.msra.mxu0 0
    %782 = vmatprep.subr.bf16.mxu0 0
    %783 = vmatpush1.bf16.msra.mxu0 0
    %784 = vmatprep.subr.bf16.mxu0 0
    %785 = vmatpush1.bf16.msra.mxu0 0
    %786 = vmatprep.subr.bf16.mxu0 0
    %787 = vmatpush1.bf16.msra.mxu0 0
    %788 = vmatprep.mubr.bf16.mxu0 0
    %789 = vmatmul.mubr.bf16.gmra.mrb[0].mxu0 %v754
    %v790 = vpop.f32.mrb[0].mxu0
    %v791 = vadd.f32 0.0, %v790
    %v792 = vpop.f32.mrb[0].mxu0
    %v793 = vpop.f32.mrb[0].mxu0
    %v794 = vadd.f32 0.0, %v793
    %v795 = vpop.f32.mrb[0].mxu0
    %796 = vdwg.mxu0
    %v797 = vadd.f32 %v718, %v791
    %v798 = vadd.f32 %v719, %v794
    %s799 = scalar_lea.vmem %s3, 32
    %v800 = vld [vmem:[%s799] sm:$0xf]
    %v801 = vld [vmem:[%s799 + $0x4] sm:$0xf]
    %v802 = vld [vmem:[%s799 + $0x8] sm:$0xf]
    %v803 = vld [vmem:[%s799 + $0xc] sm:$0xf]
    %v804 = vld [vmem:[%s799 + $0x10] sm:$0xf]
    %v805 = vld [vmem:[%s799 + $0x14] sm:$0xf]
    %v806 = vld [vmem:[%s799 + $0x18] sm:$0xf]
    %v807 = vld [vmem:[%s799 + $0x1c] sm:$0xf]
    %v816 = vunpack.c.l.b16 %v800
    %v817 = vunpack.c.l.b16 %v801
    %v818 = vunpack.c.l.b16 %v802
    %v819 = vunpack.c.l.b16 %v803
    %v820 = vunpack.c.l.b16 %v804
    %v821 = vunpack.c.l.b16 %v805
    %v822 = vunpack.c.l.b16 %v806
    %v823 = vunpack.c.l.b16 %v807
    %v824 = vpack.c.b16 %v817, %v816
    %v825 = vpack.c.b16 %v819, %v818
    %v826 = vpack.c.b16 %v821, %v820
    %v827 = vpack.c.b16 %v823, %v822
    %v833 = vsel %vm752, %v683, 0
    %835 = vmatprep.subr.bf16.mxu0 0
    %836 = vmatpush1.bf16.msra.mxu0 %v824
    %837 = vmatprep.subr.bf16.mxu0 0
    %838 = vmatpush1.bf16.msra.mxu0 %v825
    %839 = vmatprep.subr.bf16.mxu0 0
    %840 = vmatpush1.bf16.msra.mxu0 %v826
    %841 = vmatprep.subr.bf16.mxu0 0
    %842 = vmatpush1.bf16.msra.mxu0 %v827
    %843 = vmatprep.subr.bf16.mxu0 0
    %844 = vmatpush1.bf16.msra.mxu0 0
    %845 = vmatprep.subr.bf16.mxu0 0
    %846 = vmatpush1.bf16.msra.mxu0 0
    %847 = vmatprep.subr.bf16.mxu0 0
    %848 = vmatpush1.bf16.msra.mxu0 0
    %849 = vmatprep.subr.bf16.mxu0 0
    %850 = vmatpush1.bf16.msra.mxu0 0
    %851 = vmatprep.subr.bf16.mxu0 0
    %852 = vmatpush1.bf16.msra.mxu0 0
    %853 = vmatprep.subr.bf16.mxu0 0
    %854 = vmatpush1.bf16.msra.mxu0 0
    %855 = vmatprep.subr.bf16.mxu0 0
    %856 = vmatpush1.bf16.msra.mxu0 0
    %857 = vmatprep.subr.bf16.mxu0 0
    %858 = vmatpush1.bf16.msra.mxu0 0
    %859 = vmatprep.subr.bf16.mxu0 0
    %860 = vmatpush1.bf16.msra.mxu0 0
    %861 = vmatprep.subr.bf16.mxu0 0
    %862 = vmatpush1.bf16.msra.mxu0 0
    %863 = vmatprep.subr.bf16.mxu0 0
    %864 = vmatpush1.bf16.msra.mxu0 0
    %865 = vmatprep.subr.bf16.mxu0 0
    %866 = vmatpush1.bf16.msra.mxu0 0
    %867 = vmatprep.mubr.bf16.mxu0 0
    %868 = vmatmul.mubr.bf16.gmra.mrb[0].mxu0 %v833
    %v869 = vpop.f32.mrb[0].mxu0
    %v870 = vadd.f32 0.0, %v869
    %v871 = vpop.f32.mrb[0].mxu0
    %v872 = vpop.f32.mrb[0].mxu0
    %v873 = vadd.f32 0.0, %v872
    %v874 = vpop.f32.mrb[0].mxu0
    %875 = vdwg.mxu0
    %v876 = vadd.f32 %v797, %v870
    %v877 = vadd.f32 %v798, %v873
    %s878 = scalar_lea.vmem %s3, 64
    %v879 = vld [vmem:[%s878] sm:$0xf]
    %v880 = vld [vmem:[%s878 + $0x4] sm:$0xf]
    %v881 = vld [vmem:[%s878 + $0x8] sm:$0xf]
    %v882 = vld [vmem:[%s878 + $0xc] sm:$0xf]
    %v883 = vld [vmem:[%s878 + $0x10] sm:$0xf]
    %v884 = vld [vmem:[%s878 + $0x14] sm:$0xf]
    %v885 = vld [vmem:[%s878 + $0x18] sm:$0xf]
    %v886 = vld [vmem:[%s878 + $0x1c] sm:$0xf]
    %v895 = vunpack.c.l.b16 %v879
    %v896 = vunpack.c.l.b16 %v880
    %v897 = vunpack.c.l.b16 %v881
    %v898 = vunpack.c.l.b16 %v882
    %v899 = vunpack.c.l.b16 %v883
    %v900 = vunpack.c.l.b16 %v884
    %v901 = vunpack.c.l.b16 %v885
    %v902 = vunpack.c.l.b16 %v886
    %v903 = vpack.c.b16 %v896, %v895
    %v904 = vpack.c.b16 %v898, %v897
    %v905 = vpack.c.b16 %v900, %v899
    %v906 = vpack.c.b16 %v902, %v901
    %v912 = vsel %vm752, %v684, 0
    %914 = vmatprep.subr.bf16.mxu0 0
    %915 = vmatpush1.bf16.msra.mxu0 %v903
    %916 = vmatprep.subr.bf16.mxu0 0
    %917 = vmatpush1.bf16.msra.mxu0 %v904
    %918 = vmatprep.subr.bf16.mxu0 0
    %919 = vmatpush1.bf16.msra.mxu0 %v905
    %920 = vmatprep.subr.bf16.mxu0 0
    %921 = vmatpush1.bf16.msra.mxu0 %v906
    %922 = vmatprep.subr.bf16.mxu0 0
    %923 = vmatpush1.bf16.msra.mxu0 0
    %924 = vmatprep.subr.bf16.mxu0 0
    %925 = vmatpush1.bf16.msra.mxu0 0
    %926 = vmatprep.subr.bf16.mxu0 0
    %927 = vmatpush1.bf16.msra.mxu0 0
    %928 = vmatprep.subr.bf16.mxu0 0
    %929 = vmatpush1.bf16.msra.mxu0 0
    %930 = vmatprep.subr.bf16.mxu0 0
    %931 = vmatpush1.bf16.msra.mxu0 0
    %932 = vmatprep.subr.bf16.mxu0 0
    %933 = vmatpush1.bf16.msra.mxu0 0
    %934 = vmatprep.subr.bf16.mxu0 0
    %935 = vmatpush1.bf16.msra.mxu0 0
    %936 = vmatprep.subr.bf16.mxu0 0
    %937 = vmatpush1.bf16.msra.mxu0 0
    %938 = vmatprep.subr.bf16.mxu0 0
    %939 = vmatpush1.bf16.msra.mxu0 0
    %940 = vmatprep.subr.bf16.mxu0 0
    %941 = vmatpush1.bf16.msra.mxu0 0
    %942 = vmatprep.subr.bf16.mxu0 0
    %943 = vmatpush1.bf16.msra.mxu0 0
    %944 = vmatprep.subr.bf16.mxu0 0
    %945 = vmatpush1.bf16.msra.mxu0 0
    %946 = vmatprep.mubr.bf16.mxu0 0
    %947 = vmatmul.mubr.bf16.gmra.mrb[0].mxu0 %v912
    %v948 = vpop.f32.mrb[0].mxu0
    %v949 = vadd.f32 0.0, %v948
    %v950 = vpop.f32.mrb[0].mxu0
    %v951 = vpop.f32.mrb[0].mxu0
    %v952 = vadd.f32 0.0, %v951
    %v953 = vpop.f32.mrb[0].mxu0
    %954 = vdwg.mxu0
    %v955 = vadd.f32 %v876, %v949
    %v956 = vadd.f32 %v877, %v952
    %s957 = scalar_lea.vmem %s3, 96
    %v958 = vld [vmem:[%s957] sm:$0xf]
    %v959 = vld [vmem:[%s957 + $0x4] sm:$0xf]
    %v960 = vld [vmem:[%s957 + $0x8] sm:$0xf]
    %v961 = vld [vmem:[%s957 + $0xc] sm:$0xf]
    %v962 = vld [vmem:[%s957 + $0x10] sm:$0xf]
    %v963 = vld [vmem:[%s957 + $0x14] sm:$0xf]
    %v964 = vld [vmem:[%s957 + $0x18] sm:$0xf]
    %v965 = vld [vmem:[%s957 + $0x1c] sm:$0xf]
    %v974 = vunpack.c.l.b16 %v958
    %v975 = vunpack.c.l.b16 %v959
    %v976 = vunpack.c.l.b16 %v960
    %v977 = vunpack.c.l.b16 %v961
    %v978 = vunpack.c.l.b16 %v962
    %v979 = vunpack.c.l.b16 %v963
    %v980 = vunpack.c.l.b16 %v964
    %v981 = vunpack.c.l.b16 %v965
    %v982 = vpack.c.b16 %v975, %v974
    %v983 = vpack.c.b16 %v977, %v976
    %v984 = vpack.c.b16 %v979, %v978
    %v985 = vpack.c.b16 %v981, %v980
    %v991 = vsel %vm752, %v685, 0
    %993 = vmatprep.subr.bf16.mxu0 0
    %994 = vmatpush1.bf16.msra.mxu0 %v982
    %995 = vmatprep.subr.bf16.mxu0 0
    %996 = vmatpush1.bf16.msra.mxu0 %v983
    %997 = vmatprep.subr.bf16.mxu0 0
    %998 = vmatpush1.bf16.msra.mxu0 %v984
    %999 = vmatprep.subr.bf16.mxu0 0
    %1000 = vmatpush1.bf16.msra.mxu0 %v985
    %1001 = vmatprep.subr.bf16.mxu0 0
    %1002 = vmatpush1.bf16.msra.mxu0 0
    %1003 = vmatprep.subr.bf16.mxu0 0
    %1004 = vmatpush1.bf16.msra.mxu0 0
    %1005 = vmatprep.subr.bf16.mxu0 0
    %1006 = vmatpush1.bf16.msra.mxu0 0
    %1007 = vmatprep.subr.bf16.mxu0 0
    %1008 = vmatpush1.bf16.msra.mxu0 0
    %1009 = vmatprep.subr.bf16.mxu0 0
    %1010 = vmatpush1.bf16.msra.mxu0 0
    %1011 = vmatprep.subr.bf16.mxu0 0
    %1012 = vmatpush1.bf16.msra.mxu0 0
    %1013 = vmatprep.subr.bf16.mxu0 0
    %1014 = vmatpush1.bf16.msra.mxu0 0
    %1015 = vmatprep.subr.bf16.mxu0 0
    %1016 = vmatpush1.bf16.msra.mxu0 0
    %1017 = vmatprep.subr.bf16.mxu0 0
    %1018 = vmatpush1.bf16.msra.mxu0 0
    %1019 = vmatprep.subr.bf16.mxu0 0
    %1020 = vmatpush1.bf16.msra.mxu0 0
    %1021 = vmatprep.subr.bf16.mxu0 0
    %1022 = vmatpush1.bf16.msra.mxu0 0
    %1023 = vmatprep.subr.bf16.mxu0 0
    %1024 = vmatpush1.bf16.msra.mxu0 0
    %1025 = vmatprep.mubr.bf16.mxu0 0
    %1026 = vmatmul.mubr.bf16.gmra.mrb[0].mxu0 %v991
    %v1027 = vpop.f32.mrb[0].mxu0
    %v1028 = vadd.f32 0.0, %v1027
    %v1029 = vpop.f32.mrb[0].mxu0
    %v1030 = vpop.f32.mrb[0].mxu0
    %v1031 = vadd.f32 0.0, %v1030
    %v1032 = vpop.f32.mrb[0].mxu0
    %1033 = vdwg.mxu0
    %v1034 = vadd.f32 %v955, %v1028
    %v1035 = vadd.f32 %v956, %v1031
    %s1036 = scalar_lea.vmem %s3, 128
    %v1037 = vld [vmem:[%s1036] sm:$0xf]
    %v1038 = vld [vmem:[%s1036 + $0x4] sm:$0xf]
    %v1039 = vld [vmem:[%s1036 + $0x8] sm:$0xf]
    %v1040 = vld [vmem:[%s1036 + $0xc] sm:$0xf]
    %v1041 = vld [vmem:[%s1036 + $0x10] sm:$0xf]
    %v1042 = vld [vmem:[%s1036 + $0x14] sm:$0xf]
    %v1043 = vld [vmem:[%s1036 + $0x18] sm:$0xf]
    %v1044 = vld [vmem:[%s1036 + $0x1c] sm:$0xf]
    %v1053 = vunpack.c.l.b16 %v1037
    %v1054 = vunpack.c.l.b16 %v1038
    %v1055 = vunpack.c.l.b16 %v1039
    %v1056 = vunpack.c.l.b16 %v1040
    %v1057 = vunpack.c.l.b16 %v1041
    %v1058 = vunpack.c.l.b16 %v1042
    %v1059 = vunpack.c.l.b16 %v1043
    %v1060 = vunpack.c.l.b16 %v1044
    %v1061 = vpack.c.b16 %v1054, %v1053
    %v1062 = vpack.c.b16 %v1056, %v1055
    %v1063 = vpack.c.b16 %v1058, %v1057
    %v1064 = vpack.c.b16 %v1060, %v1059
    %v1070 = vsel %vm752, %v686, 0
    %1072 = vmatprep.subr.bf16.mxu0 0
    %1073 = vmatpush1.bf16.msra.mxu0 %v1061
    %1074 = vmatprep.subr.bf16.mxu0 0
    %1075 = vmatpush1.bf16.msra.mxu0 %v1062
    %1076 = vmatprep.subr.bf16.mxu0 0
    %1077 = vmatpush1.bf16.msra.mxu0 %v1063
    %1078 = vmatprep.subr.bf16.mxu0 0
    %1079 = vmatpush1.bf16.msra.mxu0 %v1064
    %1080 = vmatprep.subr.bf16.mxu0 0
    %1081 = vmatpush1.bf16.msra.mxu0 0
    %1082 = vmatprep.subr.bf16.mxu0 0
    %1083 = vmatpush1.bf16.msra.mxu0 0
    %1084 = vmatprep.subr.bf16.mxu0 0
    %1085 = vmatpush1.bf16.msra.mxu0 0
    %1086 = vmatprep.subr.bf16.mxu0 0
    %1087 = vmatpush1.bf16.msra.mxu0 0
    %1088 = vmatprep.subr.bf16.mxu0 0
    %1089 = vmatpush1.bf16.msra.mxu0 0
    %1090 = vmatprep.subr.bf16.mxu0 0
    %1091 = vmatpush1.bf16.msra.mxu0 0
    %1092 = vmatprep.subr.bf16.mxu0 0
    %1093 = vmatpush1.bf16.msra.mxu0 0
    %1094 = vmatprep.subr.bf16.mxu0 0
    %1095 = vmatpush1.bf16.msra.mxu0 0
    %1096 = vmatprep.subr.bf16.mxu0 0
    %1097 = vmatpush1.bf16.msra.mxu0 0
    %1098 = vmatprep.subr.bf16.mxu0 0
    %1099 = vmatpush1.bf16.msra.mxu0 0
    %1100 = vmatprep.subr.bf16.mxu0 0
    %1101 = vmatpush1.bf16.msra.mxu0 0
    %1102 = vmatprep.subr.bf16.mxu0 0
    %1103 = vmatpush1.bf16.msra.mxu0 0
    %1104 = vmatprep.mubr.bf16.mxu0 0
    %1105 = vmatmul.mubr.bf16.gmra.mrb[0].mxu0 %v1070
    %v1106 = vpop.f32.mrb[0].mxu0
    %v1107 = vadd.f32 0.0, %v1106
    %v1108 = vpop.f32.mrb[0].mxu0
    %v1109 = vpop.f32.mrb[0].mxu0
    %v1110 = vadd.f32 0.0, %v1109
    %v1111 = vpop.f32.mrb[0].mxu0
    %1112 = vdwg.mxu0
    %v1113 = vadd.f32 %v1034, %v1107
    %v1114 = vadd.f32 %v1035, %v1110
    %s1115 = scalar_lea.vmem %s3, 160
    %v1116 = vld [vmem:[%s1115] sm:$0xf]
    %v1117 = vld [vmem:[%s1115 + $0x4] sm:$0xf]
    %v1118 = vld [vmem:[%s1115 + $0x8] sm:$0xf]
    %v1119 = vld [vmem:[%s1115 + $0xc] sm:$0xf]
    %v1120 = vld [vmem:[%s1115 + $0x10] sm:$0xf]
    %v1121 = vld [vmem:[%s1115 + $0x14] sm:$0xf]
    %v1122 = vld [vmem:[%s1115 + $0x18] sm:$0xf]
    %v1123 = vld [vmem:[%s1115 + $0x1c] sm:$0xf]
    %v1132 = vunpack.c.l.b16 %v1116
    %v1133 = vunpack.c.l.b16 %v1117
    %v1134 = vunpack.c.l.b16 %v1118
    %v1135 = vunpack.c.l.b16 %v1119
    %v1136 = vunpack.c.l.b16 %v1120
    %v1137 = vunpack.c.l.b16 %v1121
    %v1138 = vunpack.c.l.b16 %v1122
    %v1139 = vunpack.c.l.b16 %v1123
    %v1140 = vpack.c.b16 %v1133, %v1132
    %v1141 = vpack.c.b16 %v1135, %v1134
    %v1142 = vpack.c.b16 %v1137, %v1136
    %v1143 = vpack.c.b16 %v1139, %v1138
    %v1149 = vsel %vm752, %v687, 0
    %1151 = vmatprep.subr.bf16.mxu0 0
    %1152 = vmatpush1.bf16.msra.mxu0 %v1140
    %1153 = vmatprep.subr.bf16.mxu0 0
    %1154 = vmatpush1.bf16.msra.mxu0 %v1141
    %1155 = vmatprep.subr.bf16.mxu0 0
    %1156 = vmatpush1.bf16.msra.mxu0 %v1142
    %1157 = vmatprep.subr.bf16.mxu0 0
    %1158 = vmatpush1.bf16.msra.mxu0 %v1143
    %1159 = vmatprep.subr.bf16.mxu0 0
    %1160 = vmatpush1.bf16.msra.mxu0 0
    %1161 = vmatprep.subr.bf16.mxu0 0
    %1162 = vmatpush1.bf16.msra.mxu0 0
    %1163 = vmatprep.subr.bf16.mxu0 0
    %1164 = vmatpush1.bf16.msra.mxu0 0
    %1165 = vmatprep.subr.bf16.mxu0 0
    %1166 = vmatpush1.bf16.msra.mxu0 0
    %1167 = vmatprep.subr.bf16.mxu0 0
    %1168 = vmatpush1.bf16.msra.mxu0 0
    %1169 = vmatprep.subr.bf16.mxu0 0
    %1170 = vmatpush1.bf16.msra.mxu0 0
    %1171 = vmatprep.subr.bf16.mxu0 0
    %1172 = vmatpush1.bf16.msra.mxu0 0
    %1173 = vmatprep.subr.bf16.mxu0 0
    %1174 = vmatpush1.bf16.msra.mxu0 0
    %1175 = vmatprep.subr.bf16.mxu0 0
    %1176 = vmatpush1.bf16.msra.mxu0 0
    %1177 = vmatprep.subr.bf16.mxu0 0
    %1178 = vmatpush1.bf16.msra.mxu0 0
    %1179 = vmatprep.subr.bf16.mxu0 0
    %1180 = vmatpush1.bf16.msra.mxu0 0
    %1181 = vmatprep.subr.bf16.mxu0 0
    %1182 = vmatpush1.bf16.msra.mxu0 0
    %1183 = vmatprep.mubr.bf16.mxu0 0
    %1184 = vmatmul.mubr.bf16.gmra.mrb[0].mxu0 %v1149
    %v1185 = vpop.f32.mrb[0].mxu0
    %v1186 = vadd.f32 0.0, %v1185
    %v1187 = vpop.f32.mrb[0].mxu0
    %v1188 = vpop.f32.mrb[0].mxu0
    %v1189 = vadd.f32 0.0, %v1188
    %v1190 = vpop.f32.mrb[0].mxu0
    %1191 = vdwg.mxu0
    %v1192 = vadd.f32 %v1113, %v1186
    %v1193 = vadd.f32 %v1114, %v1189
    %s1194 = scalar_lea.vmem %s3, 192
    %v1195 = vld [vmem:[%s1194] sm:$0xf]
    %v1196 = vld [vmem:[%s1194 + $0x4] sm:$0xf]
    %v1197 = vld [vmem:[%s1194 + $0x8] sm:$0xf]
    %v1198 = vld [vmem:[%s1194 + $0xc] sm:$0xf]
    %v1199 = vld [vmem:[%s1194 + $0x10] sm:$0xf]
    %v1200 = vld [vmem:[%s1194 + $0x14] sm:$0xf]
    %v1201 = vld [vmem:[%s1194 + $0x18] sm:$0xf]
    %v1202 = vld [vmem:[%s1194 + $0x1c] sm:$0xf]
    %v1211 = vunpack.c.l.b16 %v1195
    %v1212 = vunpack.c.l.b16 %v1196
    %v1213 = vunpack.c.l.b16 %v1197
    %v1214 = vunpack.c.l.b16 %v1198
    %v1215 = vunpack.c.l.b16 %v1199
    %v1216 = vunpack.c.l.b16 %v1200
    %v1217 = vunpack.c.l.b16 %v1201
    %v1218 = vunpack.c.l.b16 %v1202
    %v1219 = vpack.c.b16 %v1212, %v1211
    %v1220 = vpack.c.b16 %v1214, %v1213
    %v1221 = vpack.c.b16 %v1216, %v1215
    %v1222 = vpack.c.b16 %v1218, %v1217
    %v1228 = vsel %vm752, %v688, 0
    %1230 = vmatprep.subr.bf16.mxu0 0
    %1231 = vmatpush1.bf16.msra.mxu0 %v1219
    %1232 = vmatprep.subr.bf16.mxu0 0
    %1233 = vmatpush1.bf16.msra.mxu0 %v1220
    %1234 = vmatprep.subr.bf16.mxu0 0
    %1235 = vmatpush1.bf16.msra.mxu0 %v1221
    %1236 = vmatprep.subr.bf16.mxu0 0
    %1237 = vmatpush1.bf16.msra.mxu0 %v1222
    %1238 = vmatprep.subr.bf16.mxu0 0
    %1239 = vmatpush1.bf16.msra.mxu0 0
    %1240 = vmatprep.subr.bf16.mxu0 0
    %1241 = vmatpush1.bf16.msra.mxu0 0
    %1242 = vmatprep.subr.bf16.mxu0 0
    %1243 = vmatpush1.bf16.msra.mxu0 0
    %1244 = vmatprep.subr.bf16.mxu0 0
    %1245 = vmatpush1.bf16.msra.mxu0 0
    %1246 = vmatprep.subr.bf16.mxu0 0
    %1247 = vmatpush1.bf16.msra.mxu0 0
    %1248 = vmatprep.subr.bf16.mxu0 0
    %1249 = vmatpush1.bf16.msra.mxu0 0
    %1250 = vmatprep.subr.bf16.mxu0 0
    %1251 = vmatpush1.bf16.msra.mxu0 0
    %1252 = vmatprep.subr.bf16.mxu0 0
    %1253 = vmatpush1.bf16.msra.mxu0 0
    %1254 = vmatprep.subr.bf16.mxu0 0
    %1255 = vmatpush1.bf16.msra.mxu0 0
    %1256 = vmatprep.subr.bf16.mxu0 0
    %1257 = vmatpush1.bf16.msra.mxu0 0
    %1258 = vmatprep.subr.bf16.mxu0 0
    %1259 = vmatpush1.bf16.msra.mxu0 0
    %1260 = vmatprep.subr.bf16.mxu0 0
    %1261 = vmatpush1.bf16.msra.mxu0 0
    %1262 = vmatprep.mubr.bf16.mxu0 0
    %1263 = vmatmul.mubr.bf16.gmra.mrb[0].mxu0 %v1228
    %v1264 = vpop.f32.mrb[0].mxu0
    %v1265 = vadd.f32 0.0, %v1264
    %v1266 = vpop.f32.mrb[0].mxu0
    %v1267 = vpop.f32.mrb[0].mxu0
    %v1268 = vadd.f32 0.0, %v1267
    %v1269 = vpop.f32.mrb[0].mxu0
    %1270 = vdwg.mxu0
    %v1271 = vadd.f32 %v1192, %v1265
    %v1272 = vadd.f32 %v1193, %v1268
    %s1273 = scalar_lea.vmem %s3, 224
    %v1274 = vld [vmem:[%s1273] sm:$0xf]
    %v1275 = vld [vmem:[%s1273 + $0x4] sm:$0xf]
    %v1276 = vld [vmem:[%s1273 + $0x8] sm:$0xf]
    %v1277 = vld [vmem:[%s1273 + $0xc] sm:$0xf]
    %v1278 = vld [vmem:[%s1273 + $0x10] sm:$0xf]
    %v1279 = vld [vmem:[%s1273 + $0x14] sm:$0xf]
    %v1280 = vld [vmem:[%s1273 + $0x18] sm:$0xf]
    %v1281 = vld [vmem:[%s1273 + $0x1c] sm:$0xf]
    %v1290 = vunpack.c.l.b16 %v1274
    %v1291 = vunpack.c.l.b16 %v1275
    %v1292 = vunpack.c.l.b16 %v1276
    %v1293 = vunpack.c.l.b16 %v1277
    %v1294 = vunpack.c.l.b16 %v1278
    %v1295 = vunpack.c.l.b16 %v1279
    %v1296 = vunpack.c.l.b16 %v1280
    %v1297 = vunpack.c.l.b16 %v1281
    %v1298 = vpack.c.b16 %v1291, %v1290
    %v1299 = vpack.c.b16 %v1293, %v1292
    %v1300 = vpack.c.b16 %v1295, %v1294
    %v1301 = vpack.c.b16 %v1297, %v1296
    %v1307 = vsel %vm752, %v689, 0
    %1309 = vmatprep.subr.bf16.mxu0 0
    %1310 = vmatpush1.bf16.msra.mxu0 %v1298
    %1311 = vmatprep.subr.bf16.mxu0 0
    %1312 = vmatpush1.bf16.msra.mxu0 %v1299
    %1313 = vmatprep.subr.bf16.mxu0 0
    %1314 = vmatpush1.bf16.msra.mxu0 %v1300
    %1315 = vmatprep.subr.bf16.mxu0 0
    %1316 = vmatpush1.bf16.msra.mxu0 %v1301
    %1317 = vmatprep.subr.bf16.mxu0 0
    %1318 = vmatpush1.bf16.msra.mxu0 0
    %1319 = vmatprep.subr.bf16.mxu0 0
    %1320 = vmatpush1.bf16.msra.mxu0 0
    %1321 = vmatprep.subr.bf16.mxu0 0
    %1322 = vmatpush1.bf16.msra.mxu0 0
    %1323 = vmatprep.subr.bf16.mxu0 0
    %1324 = vmatpush1.bf16.msra.mxu0 0
    %1325 = vmatprep.subr.bf16.mxu0 0
    %1326 = vmatpush1.bf16.msra.mxu0 0
    %1327 = vmatprep.subr.bf16.mxu0 0
    %1328 = vmatpush1.bf16.msra.mxu0 0
    %1329 = vmatprep.subr.bf16.mxu0 0
    %1330 = vmatpush1.bf16.msra.mxu0 0
    %1331 = vmatprep.subr.bf16.mxu0 0
    %1332 = vmatpush1.bf16.msra.mxu0 0
    %1333 = vmatprep.subr.bf16.mxu0 0
    %1334 = vmatpush1.bf16.msra.mxu0 0
    %1335 = vmatprep.subr.bf16.mxu0 0
    %1336 = vmatpush1.bf16.msra.mxu0 0
    %1337 = vmatprep.subr.bf16.mxu0 0
    %1338 = vmatpush1.bf16.msra.mxu0 0
    %1339 = vmatprep.subr.bf16.mxu0 0
    %1340 = vmatpush1.bf16.msra.mxu0 0
    %1341 = vmatprep.mubr.bf16.mxu0 0
    %1342 = vmatmul.mubr.bf16.gmra.mrb[0].mxu0 %v1307
    %v1343 = vpop.f32.mrb[0].mxu0
    %v1344 = vadd.f32 0.0, %v1343
    %v1345 = vpop.f32.mrb[0].mxu0
    %v1346 = vpop.f32.mrb[0].mxu0
    %v1347 = vadd.f32 0.0, %v1346
    %v1348 = vpop.f32.mrb[0].mxu0
    %1349 = vdwg.mxu0
    %v1350 = vadd.f32 %v1271, %v1344
    %v1351 = vadd.f32 %v1272, %v1347
    %v1352 = vld [vmem:[%s9] sm:$0x3]
    %v1353 = vld [vmem:[%s10] sm:$0x3]
    %v1354 = vld [vmem:[%s8] sm:$0x3]
    %v1355 = vld [vmem:[%s6] sm:$0xff]
    %v1356 = vld [vmem:[%s6 + $0x8] sm:$0xff]
    %v1357 = vld [vmem:[%s6 + $0x10] sm:$0xff]
    %v1358 = vld [vmem:[%s6 + $0x18] sm:$0xff]
    %vm1359 = vcmask 261120
    %v1361 = vsel %vm1359, %v1352, 0
    %1363 = vmatprep.subr.mxu0 0.0
    %1364 = vmatpush1.msra.mxu0 %v1355
    %1365 = vmatprep.subr.mxu0 0.0
    %1366 = vmatpush1.msra.mxu0 %v1356
    %1367 = vmatprep.subr.mxu0 0.0
    %1368 = vmatpush1.msra.mxu0 %v1357
    %1369 = vmatprep.subr.mxu0 0.0
    %1370 = vmatpush1.msra.mxu0 %v1358
    %1371 = vmatprep.subr.mxu0 0.0
    %1372 = vmatpush1.msra.mxu0 0.0
    %1373 = vmatprep.subr.mxu0 0.0
    %1374 = vmatpush1.msra.mxu0 0.0
    %1375 = vmatprep.subr.mxu0 0.0
    %1376 = vmatpush1.msra.mxu0 0.0
    %1377 = vmatprep.subr.mxu0 0.0
    %1378 = vmatpush1.msra.mxu0 0.0
    %1379 = vmatprep.subr.mxu0 0.0
    %1380 = vmatpush1.msra.mxu0 0.0
    %1381 = vmatprep.subr.mxu0 0.0
    %1382 = vmatpush1.msra.mxu0 0.0
    %1383 = vmatprep.subr.mxu0 0.0
    %1384 = vmatpush1.msra.mxu0 0.0
    %1385 = vmatprep.subr.mxu0 0.0
    %1386 = vmatpush1.msra.mxu0 0.0
    %1387 = vmatprep.subr.mxu0 0.0
    %1388 = vmatpush1.msra.mxu0 0.0
    %1389 = vmatprep.subr.mxu0 0.0
    %1390 = vmatpush1.msra.mxu0 0.0
    %1391 = vmatprep.subr.mxu0 0.0
    %1392 = vmatpush1.msra.mxu0 0.0
    %1393 = vmatprep.subr.mxu0 0.0
    %1394 = vmatpush1.msra.mxu0 0.0
    %1395 = vmatprep.subr.mxu0 0.0
    %1396 = vmatpush1.msra.mxu0 0.0
    %1397 = vmatprep.subr.mxu0 0.0
    %1398 = vmatpush1.msra.mxu0 0.0
    %1399 = vmatprep.subr.mxu0 0.0
    %1400 = vmatpush1.msra.mxu0 0.0
    %1401 = vmatprep.subr.mxu0 0.0
    %1402 = vmatpush1.msra.mxu0 0.0
    %1403 = vmatprep.subr.mxu0 0.0
    %1404 = vmatpush1.msra.mxu0 0.0
    %1405 = vmatprep.subr.mxu0 0.0
    %1406 = vmatpush1.msra.mxu0 0.0
    %1407 = vmatprep.subr.mxu0 0.0
    %1408 = vmatpush1.msra.mxu0 0.0
    %1409 = vmatprep.subr.mxu0 0.0
    %1410 = vmatpush1.msra.mxu0 0.0
    %1411 = vmatprep.subr.mxu0 0.0
    %1412 = vmatpush1.msra.mxu0 0.0
    %1413 = vmatprep.subr.mxu0 0.0
    %1414 = vmatpush1.msra.mxu0 0.0
    %1415 = vmatprep.subr.mxu0 0.0
    %1416 = vmatpush1.msra.mxu0 0.0
    %1417 = vmatprep.subr.mxu0 0.0
    %1418 = vmatpush1.msra.mxu0 0.0
    %1419 = vmatprep.subr.mxu0 0.0
    %1420 = vmatpush1.msra.mxu0 0.0
    %1421 = vmatprep.subr.mxu0 0.0
    %1422 = vmatpush1.msra.mxu0 0.0
    %1423 = vmatprep.subr.mxu0 0.0
    %1424 = vmatpush1.msra.mxu0 0.0
    %1425 = vmatprep.subr.mxu0 0.0
    %1426 = vmatpush1.msra.mxu0 0.0
    %1427 = vmatprep.mubr.f32.mxu0 0.0
    %1428 = vmatmul.mubr.f32.gmra.mrb[0].mxu0 %v1361
    %v1429 = vpop.f32.mrb[0].mxu0
    %v1430 = vadd.f32 0.0, %v1429
    %v1431 = vpop.f32.mrb[0].mxu0
    %1432 = vdwg.mxu0
    %v1433 = vadd.f32 %v1350, %v1430
    %v1434 = vxor.u32 %v1433, 2147483648
    %v1435 = vmul.f32 %v1434, 1.442695
    %v1436 = vpow.pop %v1435
    %v1437 = vadd.f32 %v1436, 1.0
    %v1438 = vrcp.pop %v1437
    %v1439 = vmul.f32 1.0, %v1438
    %v1440 = vtanh.pop %v1433
    %1442 = vrot.lane.b32.xlu0 %v1353, 32
    %v1443 = vpop.permute.xlu0 %1442
    %v1445 = vmul.f32 %v1439, %v1443
    %1447 = vrot.lane.b32.xlu0 %v1440, 32
    %v1448 = vpop.permute.xlu0 %1447
    %v1450 = vmul.f32 %v1439, %v1448
    %1452 = vrot.lane.b32.xlu0 %v1450, 32
    %v1453 = vpop.permute.xlu0 %1452
    %v1455 = vadd.f32 %v1445, %v1453
    %v1456 = vtanh.pop %v1455
    %1458 = vrot.lane.b32.xlu0 %v1456, 32
    %v1459 = vpop.permute.xlu0 %1458
    %v1461 = vmul.f32 %v1439, %v1459
    %vm1462 = vcmp.gt.s32.totalorder %v1354, 0
    %v1463 = vsel %vm1462, 1, 0
    %v1464 = vcvt.s32.f32 %v1463
    %1466 = vset.pattern.permute.xlu0 0
    %1467 = vperm.xlu0 %1466, %v1464
    %v1468 = vpop.permute.xlu0 %1467
    %v1470 = vmul.f32 %v1468, %v1461
    %v1471 = vsub.f32 1.0, %v1464
    %1473 = vset.pattern.permute.xlu0 0
    %1474 = vperm.xlu0 %1473, %v1471
    %v1475 = vpop.permute.xlu0 %1474
    %v1477 = vmul.f32 %v1475, %v1352
    %1479 = vrot.lane.b32.xlu0 %v1477, 64
    %v1480 = vpop.permute.xlu0 %1479
    %v1482 = vadd.f32 %v1470, %v1480
    %v1483 = vmul.f32 %v1468, %v1455
    %v1484 = vmul.f32 %v1475, %v1353
    %1486 = vrot.lane.b32.xlu0 %v1484, 32
    %v1487 = vpop.permute.xlu0 %1486
    %v1489 = vadd.f32 %v1483, %v1487
    %1491 = vrot.lane.b32.xlu0 %v1482, 64
    %v1492 = vpop.permute.xlu0 %1491
    %v1493 = vsel %vm1359, %v1492, 0
    %1495 = vmatprep.subr.mxu0 0.0
    %1496 = vmatpush1.msra.mxu0 %v1355
    %1497 = vmatprep.subr.mxu0 0.0
    %1498 = vmatpush1.msra.mxu0 %v1356
    %1499 = vmatprep.subr.mxu0 0.0
    %1500 = vmatpush1.msra.mxu0 %v1357
    %1501 = vmatprep.subr.mxu0 0.0
    %1502 = vmatpush1.msra.mxu0 %v1358
    %1503 = vmatprep.subr.mxu0 0.0
    %1504 = vmatpush1.msra.mxu0 0.0
    %1505 = vmatprep.subr.mxu0 0.0
    %1506 = vmatpush1.msra.mxu0 0.0
    %1507 = vmatprep.subr.mxu0 0.0
    %1508 = vmatpush1.msra.mxu0 0.0
    %1509 = vmatprep.subr.mxu0 0.0
    %1510 = vmatpush1.msra.mxu0 0.0
    %1511 = vmatprep.subr.mxu0 0.0
    %1512 = vmatpush1.msra.mxu0 0.0
    %1513 = vmatprep.subr.mxu0 0.0
    %1514 = vmatpush1.msra.mxu0 0.0
    %1515 = vmatprep.subr.mxu0 0.0
    %1516 = vmatpush1.msra.mxu0 0.0
    %1517 = vmatprep.subr.mxu0 0.0
    %1518 = vmatpush1.msra.mxu0 0.0
    %1519 = vmatprep.subr.mxu0 0.0
    %1520 = vmatpush1.msra.mxu0 0.0
    %1521 = vmatprep.subr.mxu0 0.0
    %1522 = vmatpush1.msra.mxu0 0.0
    %1523 = vmatprep.subr.mxu0 0.0
    %1524 = vmatpush1.msra.mxu0 0.0
    %1525 = vmatprep.subr.mxu0 0.0
    %1526 = vmatpush1.msra.mxu0 0.0
    %1527 = vmatprep.subr.mxu0 0.0
    %1528 = vmatpush1.msra.mxu0 0.0
    %1529 = vmatprep.subr.mxu0 0.0
    %1530 = vmatpush1.msra.mxu0 0.0
    %1531 = vmatprep.subr.mxu0 0.0
    %1532 = vmatpush1.msra.mxu0 0.0
    %1533 = vmatprep.subr.mxu0 0.0
    %1534 = vmatpush1.msra.mxu0 0.0
    %1535 = vmatprep.subr.mxu0 0.0
    %1536 = vmatpush1.msra.mxu0 0.0
    %1537 = vmatprep.subr.mxu0 0.0
    %1538 = vmatpush1.msra.mxu0 0.0
    %1539 = vmatprep.subr.mxu0 0.0
    %1540 = vmatpush1.msra.mxu0 0.0
    %1541 = vmatprep.subr.mxu0 0.0
    %1542 = vmatpush1.msra.mxu0 0.0
    %1543 = vmatprep.subr.mxu0 0.0
    %1544 = vmatpush1.msra.mxu0 0.0
    %1545 = vmatprep.subr.mxu0 0.0
    %1546 = vmatpush1.msra.mxu0 0.0
    %1547 = vmatprep.subr.mxu0 0.0
    %1548 = vmatpush1.msra.mxu0 0.0
    %1549 = vmatprep.subr.mxu0 0.0
    %1550 = vmatpush1.msra.mxu0 0.0
    %1551 = vmatprep.subr.mxu0 0.0
    %1552 = vmatpush1.msra.mxu0 0.0
    %1553 = vmatprep.subr.mxu0 0.0
    %1554 = vmatpush1.msra.mxu0 0.0
    %1555 = vmatprep.subr.mxu0 0.0
    %1556 = vmatpush1.msra.mxu0 0.0
    %1557 = vmatprep.subr.mxu0 0.0
    %1558 = vmatpush1.msra.mxu0 0.0
    %1559 = vmatprep.mubr.f32.mxu0 0.0
    %1560 = vmatmul.mubr.f32.gmra.mrb[0].mxu0 %v1493
    %v1561 = vpop.f32.mrb[0].mxu0
    %v1562 = vadd.f32 0.0, %v1561
    %v1563 = vpop.f32.mrb[0].mxu0
    %1564 = vdwg.mxu0
    %v1566 = vrot.slane %v1562, 6
    %v1568 = vadd.f32 %v1350, %v1566
    %v1569 = vxor.u32 %v1568, 2147483648
    %v1570 = vmul.f32 %v1569, 1.442695
    %v1571 = vpow.pop %v1570
    %v1572 = vadd.f32 %v1571, 1.0
    %v1573 = vrcp.pop %v1572
    %v1574 = vmul.f32 1.0, %v1573
    %v1575 = vtanh.pop %v1568
    %v1577 = vrot.slane %v1489, 6
    %v1579 = vmul.f32 %v1574, %v1577
    %1581 = vrot.lane.b32.xlu0 %v1575, 32
    %v1582 = vpop.permute.xlu0 %1581
    %v1584 = vmul.f32 %v1574, %v1582
    %1586 = vrot.lane.b32.xlu0 %v1584, 32
    %v1587 = vpop.permute.xlu0 %1586
    %v1589 = vadd.f32 %v1579, %v1587
    %v1590 = vtanh.pop %v1589
    %1592 = vrot.lane.b32.xlu0 %v1590, 32
    %v1593 = vpop.permute.xlu0 %1592
    %v1595 = vmul.f32 %v1574, %v1593
    %vm1596 = vcmp.gt.s32.totalorder %v1354, 1
    %v1597 = vsel %vm1596, 1, 0
    %v1598 = vcvt.s32.f32 %v1597
    %1600 = vset.pattern.permute.xlu0 0
    %1601 = vperm.xlu0 %1600, %v1598
    %v1602 = vpop.permute.xlu0 %1601
    %v1605 = vrot.slane %v1595, 2
    %1606 = vrot.lane.b32.xlu0 %v1605, 64
    %v1607 = vpop.permute.xlu0 %1606
    %v1609 = vmul.f32 %v1602, %v1607
    %v1610 = vsub.f32 1.0, %v1598
    %1612 = vset.pattern.permute.xlu0 0
    %1613 = vperm.xlu0 %1612, %v1610
    %v1614 = vpop.permute.xlu0 %1613
    %v1616 = vmul.f32 %v1614, %v1482
    %1618 = vrot.lane.b32.xlu0 %v1616, 64
    %v1619 = vpop.permute.xlu0 %1618
    %v1621 = vadd.f32 %v1609, %v1619
    %v1623 = vrot.slane %v1589, 2
    %1624 = vrot.lane.b32.xlu0 %v1623, 96
    %v1625 = vpop.permute.xlu0 %1624
    %v1627 = vmul.f32 %v1602, %v1625
    %v1628 = vmul.f32 %v1614, %v1489
    %1630 = vrot.lane.b32.xlu0 %v1628, 96
    %v1631 = vpop.permute.xlu0 %1630
    %v1633 = vadd.f32 %v1627, %v1631
    %v1635 = vsel %vm1359, %v1621, 0
    %1637 = vmatprep.subr.mxu0 0.0
    %1638 = vmatpush1.msra.mxu0 %v1355
    %1639 = vmatprep.subr.mxu0 0.0
    %1640 = vmatpush1.msra.mxu0 %v1356
    %1641 = vmatprep.subr.mxu0 0.0
    %1642 = vmatpush1.msra.mxu0 %v1357
    %1643 = vmatprep.subr.mxu0 0.0
    %1644 = vmatpush1.msra.mxu0 %v1358
    %1645 = vmatprep.subr.mxu0 0.0
    %1646 = vmatpush1.msra.mxu0 0.0
    %1647 = vmatprep.subr.mxu0 0.0
    %1648 = vmatpush1.msra.mxu0 0.0
    %1649 = vmatprep.subr.mxu0 0.0
    %1650 = vmatpush1.msra.mxu0 0.0
    %1651 = vmatprep.subr.mxu0 0.0
    %1652 = vmatpush1.msra.mxu0 0.0
    %1653 = vmatprep.subr.mxu0 0.0
    %1654 = vmatpush1.msra.mxu0 0.0
    %1655 = vmatprep.subr.mxu0 0.0
    %1656 = vmatpush1.msra.mxu0 0.0
    %1657 = vmatprep.subr.mxu0 0.0
    %1658 = vmatpush1.msra.mxu0 0.0
    %1659 = vmatprep.subr.mxu0 0.0
    %1660 = vmatpush1.msra.mxu0 0.0
    %1661 = vmatprep.subr.mxu0 0.0
    %1662 = vmatpush1.msra.mxu0 0.0
    %1663 = vmatprep.subr.mxu0 0.0
    %1664 = vmatpush1.msra.mxu0 0.0
    %1665 = vmatprep.subr.mxu0 0.0
    %1666 = vmatpush1.msra.mxu0 0.0
    %1667 = vmatprep.subr.mxu0 0.0
    %1668 = vmatpush1.msra.mxu0 0.0
    %1669 = vmatprep.subr.mxu0 0.0
    %1670 = vmatpush1.msra.mxu0 0.0
    %1671 = vmatprep.subr.mxu0 0.0
    %1672 = vmatpush1.msra.mxu0 0.0
    %1673 = vmatprep.subr.mxu0 0.0
    %1674 = vmatpush1.msra.mxu0 0.0
    %1675 = vmatprep.subr.mxu0 0.0
    %1676 = vmatpush1.msra.mxu0 0.0
    %1677 = vmatprep.subr.mxu0 0.0
    %1678 = vmatpush1.msra.mxu0 0.0
    %1679 = vmatprep.subr.mxu0 0.0
    %1680 = vmatpush1.msra.mxu0 0.0
    %1681 = vmatprep.subr.mxu0 0.0
    %1682 = vmatpush1.msra.mxu0 0.0
    %1683 = vmatprep.subr.mxu0 0.0
    %1684 = vmatpush1.msra.mxu0 0.0
    %1685 = vmatprep.subr.mxu0 0.0
    %1686 = vmatpush1.msra.mxu0 0.0
    %1687 = vmatprep.subr.mxu0 0.0
    %1688 = vmatpush1.msra.mxu0 0.0
    %1689 = vmatprep.subr.mxu0 0.0
    %1690 = vmatpush1.msra.mxu0 0.0
    %1691 = vmatprep.subr.mxu0 0.0
    %1692 = vmatpush1.msra.mxu0 0.0
    %1693 = vmatprep.subr.mxu0 0.0
    %1694 = vmatpush1.msra.mxu0 0.0
    %1695 = vmatprep.subr.mxu0 0.0
    %1696 = vmatpush1.msra.mxu0 0.0
    %1697 = vmatprep.subr.mxu0 0.0
    %1698 = vmatpush1.msra.mxu0 0.0
    %1699 = vmatprep.subr.mxu0 0.0
    %1700 = vmatpush1.msra.mxu0 0.0
    %1701 = vmatprep.mubr.f32.mxu0 0.0
    %1702 = vmatmul.mubr.f32.gmra.mrb[0].mxu0 %v1635
    %v1703 = vpop.f32.mrb[0].mxu0
    %v1704 = vadd.f32 0.0, %v1703
    %v1705 = vpop.f32.mrb[0].mxu0
    %1706 = vdwg.mxu0
    %v1708 = vrot.slane %v1704, 4
    %v1710 = vadd.f32 %v1350, %v1708
    %v1711 = vxor.u32 %v1710, 2147483648
    %v1712 = vmul.f32 %v1711, 1.442695
    %v1713 = vpow.pop %v1712
    %v1714 = vadd.f32 %v1713, 1.0
    %v1715 = vrcp.pop %v1714
    %v1716 = vmul.f32 1.0, %v1715
    %v1717 = vtanh.pop %v1710
    %v1719 = vrot.slane %v1633, 4
    %1720 = vrot.lane.b32.xlu0 %v1719, 32
    %v1721 = vpop.permute.xlu0 %1720
    %v1723 = vmul.f32 %v1716, %v1721
    %1725 = vrot.lane.b32.xlu0 %v1717, 32
    %v1726 = vpop.permute.xlu0 %1725
    %v1728 = vmul.f32 %v1716, %v1726
    %1730 = vrot.lane.b32.xlu0 %v1728, 32
    %v1731 = vpop.permute.xlu0 %1730
    %v1733 = vadd.f32 %v1723, %v1731
    %v1734 = vtanh.pop %v1733
    %1736 = vrot.lane.b32.xlu0 %v1734, 32
    %v1737 = vpop.permute.xlu0 %1736
    %v1739 = vmul.f32 %v1716, %v1737
    %vm1740 = vcmp.gt.s32.totalorder %v1354, 2
    %v1741 = vsel %vm1740, 1, 0
    %v1742 = vcvt.s32.f32 %v1741
    %1744 = vset.pattern.permute.xlu0 0
    %1745 = vperm.xlu0 %1744, %v1742
    %v1746 = vpop.permute.xlu0 %1745
    %v1749 = vrot.slane %v1739, 4
    %1750 = vrot.lane.b32.xlu0 %v1749, 64
    %v1751 = vpop.permute.xlu0 %1750
    %v1753 = vmul.f32 %v1746, %v1751
    %v1754 = vsub.f32 1.0, %v1742
    %1756 = vset.pattern.permute.xlu0 0
    %1757 = vperm.xlu0 %1756, %v1754
    %v1758 = vpop.permute.xlu0 %1757
    %v1760 = vmul.f32 %v1758, %v1621
    %v1761 = vadd.f32 %v1753, %v1760
    %v1763 = vrot.slane %v1733, 4
    %1764 = vrot.lane.b32.xlu0 %v1763, 96
    %v1765 = vpop.permute.xlu0 %1764
    %v1767 = vmul.f32 %v1746, %v1765
    %v1768 = vmul.f32 %v1758, %v1633
    %v1769 = vadd.f32 %v1767, %v1768
    %v1771 = vsel %vm1359, %v1761, 0
    %1773 = vmatprep.subr.mxu0 0.0
    %1774 = vmatpush1.msra.mxu0 %v1355
    %1775 = vmatprep.subr.mxu0 0.0
    %1776 = vmatpush1.msra.mxu0 %v1356
    %1777 = vmatprep.subr.mxu0 0.0
    %1778 = vmatpush1.msra.mxu0 %v1357
    %1779 = vmatprep.subr.mxu0 0.0
    %1780 = vmatpush1.msra.mxu0 %v1358
    %1781 = vmatprep.subr.mxu0 0.0
    %1782 = vmatpush1.msra.mxu0 0.0
    %1783 = vmatprep.subr.mxu0 0.0
    %1784 = vmatpush1.msra.mxu0 0.0
    %1785 = vmatprep.subr.mxu0 0.0
    %1786 = vmatpush1.msra.mxu0 0.0
    %1787 = vmatprep.subr.mxu0 0.0
    %1788 = vmatpush1.msra.mxu0 0.0
    %1789 = vmatprep.subr.mxu0 0.0
    %1790 = vmatpush1.msra.mxu0 0.0
    %1791 = vmatprep.subr.mxu0 0.0
    %1792 = vmatpush1.msra.mxu0 0.0
    %1793 = vmatprep.subr.mxu0 0.0
    %1794 = vmatpush1.msra.mxu0 0.0
    %1795 = vmatprep.subr.mxu0 0.0
    %1796 = vmatpush1.msra.mxu0 0.0
    %1797 = vmatprep.subr.mxu0 0.0
    %1798 = vmatpush1.msra.mxu0 0.0
    %1799 = vmatprep.subr.mxu0 0.0
    %1800 = vmatpush1.msra.mxu0 0.0
    %1801 = vmatprep.subr.mxu0 0.0
    %1802 = vmatpush1.msra.mxu0 0.0
    %1803 = vmatprep.subr.mxu0 0.0
    %1804 = vmatpush1.msra.mxu0 0.0
    %1805 = vmatprep.subr.mxu0 0.0
    %1806 = vmatpush1.msra.mxu0 0.0
    %1807 = vmatprep.subr.mxu0 0.0
    %1808 = vmatpush1.msra.mxu0 0.0
    %1809 = vmatprep.subr.mxu0 0.0
    %1810 = vmatpush1.msra.mxu0 0.0
    %1811 = vmatprep.subr.mxu0 0.0
    %1812 = vmatpush1.msra.mxu0 0.0
    %1813 = vmatprep.subr.mxu0 0.0
    %1814 = vmatpush1.msra.mxu0 0.0
    %1815 = vmatprep.subr.mxu0 0.0
    %1816 = vmatpush1.msra.mxu0 0.0
    %1817 = vmatprep.subr.mxu0 0.0
    %1818 = vmatpush1.msra.mxu0 0.0
    %1819 = vmatprep.subr.mxu0 0.0
    %1820 = vmatpush1.msra.mxu0 0.0
    %1821 = vmatprep.subr.mxu0 0.0
    %1822 = vmatpush1.msra.mxu0 0.0
    %1823 = vmatprep.subr.mxu0 0.0
    %1824 = vmatpush1.msra.mxu0 0.0
    %1825 = vmatprep.subr.mxu0 0.0
    %1826 = vmatpush1.msra.mxu0 0.0
    %1827 = vmatprep.subr.mxu0 0.0
    %1828 = vmatpush1.msra.mxu0 0.0
    %1829 = vmatprep.subr.mxu0 0.0
    %1830 = vmatpush1.msra.mxu0 0.0
    %1831 = vmatprep.subr.mxu0 0.0
    %1832 = vmatpush1.msra.mxu0 0.0
    %1833 = vmatprep.subr.mxu0 0.0
    %1834 = vmatpush1.msra.mxu0 0.0
    %1835 = vmatprep.subr.mxu0 0.0
    %1836 = vmatpush1.msra.mxu0 0.0
    %1837 = vmatprep.mubr.f32.mxu0 0.0
    %1838 = vmatmul.mubr.f32.gmra.mrb[0].mxu0 %v1771
    %v1839 = vpop.f32.mrb[0].mxu0
    %v1840 = vadd.f32 0.0, %v1839
    %v1841 = vpop.f32.mrb[0].mxu0
    %1842 = vdwg.mxu0
    %v1844 = vrot.slane %v1840, 2
    %v1846 = vadd.f32 %v1350, %v1844
    %v1847 = vxor.u32 %v1846, 2147483648
    %v1848 = vmul.f32 %v1847, 1.442695
    %v1849 = vpow.pop %v1848
    %v1850 = vadd.f32 %v1849, 1.0
    %v1851 = vrcp.pop %v1850
    %v1852 = vmul.f32 1.0, %v1851
    %v1853 = vtanh.pop %v1846
    %v1855 = vrot.slane %v1769, 2
    %1856 = vrot.lane.b32.xlu0 %v1855, 32
    %v1857 = vpop.permute.xlu0 %1856
    %v1859 = vmul.f32 %v1852, %v1857
    %1861 = vrot.lane.b32.xlu0 %v1853, 32
    %v1862 = vpop.permute.xlu0 %1861
    %v1864 = vmul.f32 %v1852, %v1862
    %1866 = vrot.lane.b32.xlu0 %v1864, 32
    %v1867 = vpop.permute.xlu0 %1866
    %v1869 = vadd.f32 %v1859, %v1867
    %v1870 = vtanh.pop %v1869
    %1872 = vrot.lane.b32.xlu0 %v1870, 32
    %v1873 = vpop.permute.xlu0 %1872
    %v1875 = vmul.f32 %v1852, %v1873
    %vm1876 = vcmp.gt.s32.totalorder %v1354, 3
    %v1877 = vsel %vm1876, 1, 0
    %v1878 = vcvt.s32.f32 %v1877
    %1880 = vset.pattern.permute.xlu0 0
    %1881 = vperm.xlu0 %1880, %v1878
    %v1882 = vpop.permute.xlu0 %1881
    %v1885 = vrot.slane %v1875, 6
    %1886 = vrot.lane.b32.xlu0 %v1885, 64
    %v1887 = vpop.permute.xlu0 %1886
    %v1889 = vmul.f32 %v1882, %v1887
    %v1890 = vsub.f32 1.0, %v1878
    %1892 = vset.pattern.permute.xlu0 0
    %1893 = vperm.xlu0 %1892, %v1890
    %v1894 = vpop.permute.xlu0 %1893
    %v1896 = vmul.f32 %v1894, %v1761
    %v1897 = vadd.f32 %v1889, %v1896
    %v1899 = vrot.slane %v1869, 6
    %1900 = vrot.lane.b32.xlu0 %v1899, 96
    %v1901 = vpop.permute.xlu0 %1900
    %v1903 = vmul.f32 %v1882, %v1901
    %v1904 = vmul.f32 %v1894, %v1769
    %v1905 = vadd.f32 %v1903, %v1904
    %v1907 = vsel %vm1359, %v1897, 0
    %1909 = vmatprep.subr.mxu0 0.0
    %1910 = vmatpush1.msra.mxu0 %v1355
    %1911 = vmatprep.subr.mxu0 0.0
    %1912 = vmatpush1.msra.mxu0 %v1356
    %1913 = vmatprep.subr.mxu0 0.0
    %1914 = vmatpush1.msra.mxu0 %v1357
    %1915 = vmatprep.subr.mxu0 0.0
    %1916 = vmatpush1.msra.mxu0 %v1358
    %1917 = vmatprep.subr.mxu0 0.0
    %1918 = vmatpush1.msra.mxu0 0.0
    %1919 = vmatprep.subr.mxu0 0.0
    %1920 = vmatpush1.msra.mxu0 0.0
    %1921 = vmatprep.subr.mxu0 0.0
    %1922 = vmatpush1.msra.mxu0 0.0
    %1923 = vmatprep.subr.mxu0 0.0
    %1924 = vmatpush1.msra.mxu0 0.0
    %1925 = vmatprep.subr.mxu0 0.0
    %1926 = vmatpush1.msra.mxu0 0.0
    %1927 = vmatprep.subr.mxu0 0.0
    %1928 = vmatpush1.msra.mxu0 0.0
    %1929 = vmatprep.subr.mxu0 0.0
    %1930 = vmatpush1.msra.mxu0 0.0
    %1931 = vmatprep.subr.mxu0 0.0
    %1932 = vmatpush1.msra.mxu0 0.0
    %1933 = vmatprep.subr.mxu0 0.0
    %1934 = vmatpush1.msra.mxu0 0.0
    %1935 = vmatprep.subr.mxu0 0.0
    %1936 = vmatpush1.msra.mxu0 0.0
    %1937 = vmatprep.subr.mxu0 0.0
    %1938 = vmatpush1.msra.mxu0 0.0
    %1939 = vmatprep.subr.mxu0 0.0
    %1940 = vmatpush1.msra.mxu0 0.0
    %1941 = vmatprep.subr.mxu0 0.0
    %1942 = vmatpush1.msra.mxu0 0.0
    %1943 = vmatprep.subr.mxu0 0.0
    %1944 = vmatpush1.msra.mxu0 0.0
    %1945 = vmatprep.subr.mxu0 0.0
    %1946 = vmatpush1.msra.mxu0 0.0
    %1947 = vmatprep.subr.mxu0 0.0
    %1948 = vmatpush1.msra.mxu0 0.0
    %1949 = vmatprep.subr.mxu0 0.0
    %1950 = vmatpush1.msra.mxu0 0.0
    %1951 = vmatprep.subr.mxu0 0.0
    %1952 = vmatpush1.msra.mxu0 0.0
    %1953 = vmatprep.subr.mxu0 0.0
    %1954 = vmatpush1.msra.mxu0 0.0
    %1955 = vmatprep.subr.mxu0 0.0
    %1956 = vmatpush1.msra.mxu0 0.0
    %1957 = vmatprep.subr.mxu0 0.0
    %1958 = vmatpush1.msra.mxu0 0.0
    %1959 = vmatprep.subr.mxu0 0.0
    %1960 = vmatpush1.msra.mxu0 0.0
    %1961 = vmatprep.subr.mxu0 0.0
    %1962 = vmatpush1.msra.mxu0 0.0
    %1963 = vmatprep.subr.mxu0 0.0
    %1964 = vmatpush1.msra.mxu0 0.0
    %1965 = vmatprep.subr.mxu0 0.0
    %1966 = vmatpush1.msra.mxu0 0.0
    %1967 = vmatprep.subr.mxu0 0.0
    %1968 = vmatpush1.msra.mxu0 0.0
    %1969 = vmatprep.subr.mxu0 0.0
    %1970 = vmatpush1.msra.mxu0 0.0
    %1971 = vmatprep.subr.mxu0 0.0
    %1972 = vmatpush1.msra.mxu0 0.0
    %1973 = vmatprep.mubr.f32.mxu0 0.0
    %1974 = vmatmul.mubr.f32.gmra.mrb[0].mxu0 %v1907
    %v1975 = vpop.f32.mrb[0].mxu0
    %v1976 = vadd.f32 0.0, %v1975
    %v1977 = vpop.f32.mrb[0].mxu0
    %1978 = vdwg.mxu0
    %v1979 = vadd.f32 %v1351, %v1976
    %v1980 = vxor.u32 %v1979, 2147483648
    %v1981 = vmul.f32 %v1980, 1.442695
    %v1982 = vpow.pop %v1981
    %v1983 = vadd.f32 %v1982, 1.0
    %v1984 = vrcp.pop %v1983
    %v1985 = vmul.f32 1.0, %v1984
    %v1986 = vtanh.pop %v1979
    %1988 = vrot.lane.b32.xlu0 %v1905, 32
    %v1989 = vpop.permute.xlu0 %1988
    %v1991 = vmul.f32 %v1985, %v1989
    %1993 = vrot.lane.b32.xlu0 %v1986, 32
    %v1994 = vpop.permute.xlu0 %1993
    %v1996 = vmul.f32 %v1985, %v1994
    %1998 = vrot.lane.b32.xlu0 %v1996, 32
    %v1999 = vpop.permute.xlu0 %1998
    %v2001 = vadd.f32 %v1991, %v1999
    %v2002 = vtanh.pop %v2001
    %2004 = vrot.lane.b32.xlu0 %v2002, 32
    %v2005 = vpop.permute.xlu0 %2004
    %v2007 = vmul.f32 %v1985, %v2005
    %vm2008 = vcmp.gt.s32.totalorder %v1354, 4
    %v2009 = vsel %vm2008, 1, 0
    %v2010 = vcvt.s32.f32 %v2009
    %2012 = vset.pattern.permute.xlu0 0
    %2013 = vperm.xlu0 %2012, %v2010
    %v2014 = vpop.permute.xlu0 %2013
    %v2016 = vmul.f32 %v2014, %v2007
    %v2017 = vsub.f32 1.0, %v2010
    %2019 = vset.pattern.permute.xlu0 0
    %2020 = vperm.xlu0 %2019, %v2017
    %v2021 = vpop.permute.xlu0 %2020
    %v2023 = vmul.f32 %v2021, %v1897
    %2025 = vrot.lane.b32.xlu0 %v2023, 64
    %v2026 = vpop.permute.xlu0 %2025
    %v2028 = vadd.f32 %v2016, %v2026
    %v2029 = vmul.f32 %v2014, %v2001
    %v2030 = vmul.f32 %v2021, %v1905
    %2032 = vrot.lane.b32.xlu0 %v2030, 32
    %v2033 = vpop.permute.xlu0 %2032
    %v2035 = vadd.f32 %v2029, %v2033
    %2037 = vrot.lane.b32.xlu0 %v2028, 64
    %v2038 = vpop.permute.xlu0 %2037
    %v2039 = vsel %vm1359, %v2038, 0
    %2041 = vmatprep.subr.mxu0 0.0
    %2042 = vmatpush1.msra.mxu0 %v1355
    %2043 = vmatprep.subr.mxu0 0.0
    %2044 = vmatpush1.msra.mxu0 %v1356
    %2045 = vmatprep.subr.mxu0 0.0
    %2046 = vmatpush1.msra.mxu0 %v1357
    %2047 = vmatprep.subr.mxu0 0.0
    %2048 = vmatpush1.msra.mxu0 %v1358
    %2049 = vmatprep.subr.mxu0 0.0
    %2050 = vmatpush1.msra.mxu0 0.0
    %2051 = vmatprep.subr.mxu0 0.0
    %2052 = vmatpush1.msra.mxu0 0.0
    %2053 = vmatprep.subr.mxu0 0.0
    %2054 = vmatpush1.msra.mxu0 0.0
    %2055 = vmatprep.subr.mxu0 0.0
    %2056 = vmatpush1.msra.mxu0 0.0
    %2057 = vmatprep.subr.mxu0 0.0
    %2058 = vmatpush1.msra.mxu0 0.0
    %2059 = vmatprep.subr.mxu0 0.0
    %2060 = vmatpush1.msra.mxu0 0.0
    %2061 = vmatprep.subr.mxu0 0.0
    %2062 = vmatpush1.msra.mxu0 0.0
    %2063 = vmatprep.subr.mxu0 0.0
    %2064 = vmatpush1.msra.mxu0 0.0
    %2065 = vmatprep.subr.mxu0 0.0
    %2066 = vmatpush1.msra.mxu0 0.0
    %2067 = vmatprep.subr.mxu0 0.0
    %2068 = vmatpush1.msra.mxu0 0.0
    %2069 = vmatprep.subr.mxu0 0.0
    %2070 = vmatpush1.msra.mxu0 0.0
    %2071 = vmatprep.subr.mxu0 0.0
    %2072 = vmatpush1.msra.mxu0 0.0
    %2073 = vmatprep.subr.mxu0 0.0
    %2074 = vmatpush1.msra.mxu0 0.0
    %2075 = vmatprep.subr.mxu0 0.0
    %2076 = vmatpush1.msra.mxu0 0.0
    %2077 = vmatprep.subr.mxu0 0.0
    %2078 = vmatpush1.msra.mxu0 0.0
    %2079 = vmatprep.subr.mxu0 0.0
    %2080 = vmatpush1.msra.mxu0 0.0
    %2081 = vmatprep.subr.mxu0 0.0
    %2082 = vmatpush1.msra.mxu0 0.0
    %2083 = vmatprep.subr.mxu0 0.0
    %2084 = vmatpush1.msra.mxu0 0.0
    %2085 = vmatprep.subr.mxu0 0.0
    %2086 = vmatpush1.msra.mxu0 0.0
    %2087 = vmatprep.subr.mxu0 0.0
    %2088 = vmatpush1.msra.mxu0 0.0
    %2089 = vmatprep.subr.mxu0 0.0
    %2090 = vmatpush1.msra.mxu0 0.0
    %2091 = vmatprep.subr.mxu0 0.0
    %2092 = vmatpush1.msra.mxu0 0.0
    %2093 = vmatprep.subr.mxu0 0.0
    %2094 = vmatpush1.msra.mxu0 0.0
    %2095 = vmatprep.subr.mxu0 0.0
    %2096 = vmatpush1.msra.mxu0 0.0
    %2097 = vmatprep.subr.mxu0 0.0
    %2098 = vmatpush1.msra.mxu0 0.0
    %2099 = vmatprep.subr.mxu0 0.0
    %2100 = vmatpush1.msra.mxu0 0.0
    %2101 = vmatprep.subr.mxu0 0.0
    %2102 = vmatpush1.msra.mxu0 0.0
    %2103 = vmatprep.subr.mxu0 0.0
    %2104 = vmatpush1.msra.mxu0 0.0
    %2105 = vmatprep.mubr.f32.mxu0 0.0
    %2106 = vmatmul.mubr.f32.gmra.mrb[0].mxu0 %v2039
    %v2107 = vpop.f32.mrb[0].mxu0
    %v2108 = vadd.f32 0.0, %v2107
    %v2109 = vpop.f32.mrb[0].mxu0
    %2110 = vdwg.mxu0
    %v2112 = vrot.slane %v2108, 6
    %v2114 = vadd.f32 %v1351, %v2112
    %v2115 = vxor.u32 %v2114, 2147483648
    %v2116 = vmul.f32 %v2115, 1.442695
    %v2117 = vpow.pop %v2116
    %v2118 = vadd.f32 %v2117, 1.0
    %v2119 = vrcp.pop %v2118
    %v2120 = vmul.f32 1.0, %v2119
    %v2121 = vtanh.pop %v2114
    %v2123 = vrot.slane %v2035, 6
    %v2125 = vmul.f32 %v2120, %v2123
    %2127 = vrot.lane.b32.xlu0 %v2121, 32
    %v2128 = vpop.permute.xlu0 %2127
    %v2130 = vmul.f32 %v2120, %v2128
    %2132 = vrot.lane.b32.xlu0 %v2130, 32
    %v2133 = vpop.permute.xlu0 %2132
    %v2135 = vadd.f32 %v2125, %v2133
    %v2136 = vtanh.pop %v2135
    %2138 = vrot.lane.b32.xlu0 %v2136, 32
    %v2139 = vpop.permute.xlu0 %2138
    %v2141 = vmul.f32 %v2120, %v2139
    %vm2142 = vcmp.gt.s32.totalorder %v1354, 5
    %v2143 = vsel %vm2142, 1, 0
    %v2144 = vcvt.s32.f32 %v2143
    %2146 = vset.pattern.permute.xlu0 0
    %2147 = vperm.xlu0 %2146, %v2144
    %v2148 = vpop.permute.xlu0 %2147
    %v2151 = vrot.slane %v2141, 2
    %2152 = vrot.lane.b32.xlu0 %v2151, 64
    %v2153 = vpop.permute.xlu0 %2152
    %v2155 = vmul.f32 %v2148, %v2153
    %v2156 = vsub.f32 1.0, %v2144
    %2158 = vset.pattern.permute.xlu0 0
    %2159 = vperm.xlu0 %2158, %v2156
    %v2160 = vpop.permute.xlu0 %2159
    %v2162 = vmul.f32 %v2160, %v2028
    %2164 = vrot.lane.b32.xlu0 %v2162, 64
    %v2165 = vpop.permute.xlu0 %2164
    %v2167 = vadd.f32 %v2155, %v2165
    %v2169 = vrot.slane %v2135, 2
    %2170 = vrot.lane.b32.xlu0 %v2169, 96
    %v2171 = vpop.permute.xlu0 %2170
    %v2173 = vmul.f32 %v2148, %v2171
    %v2174 = vmul.f32 %v2160, %v2035
    %2176 = vrot.lane.b32.xlu0 %v2174, 96
    %v2177 = vpop.permute.xlu0 %2176
    %v2179 = vadd.f32 %v2173, %v2177
    %v2181 = vsel %vm1359, %v2167, 0
    %2183 = vmatprep.subr.mxu0 0.0
    %2184 = vmatpush1.msra.mxu0 %v1355
    %2185 = vmatprep.subr.mxu0 0.0
    %2186 = vmatpush1.msra.mxu0 %v1356
    %2187 = vmatprep.subr.mxu0 0.0
    %2188 = vmatpush1.msra.mxu0 %v1357
    %2189 = vmatprep.subr.mxu0 0.0
    %2190 = vmatpush1.msra.mxu0 %v1358
    %2191 = vmatprep.subr.mxu0 0.0
    %2192 = vmatpush1.msra.mxu0 0.0
    %2193 = vmatprep.subr.mxu0 0.0
    %2194 = vmatpush1.msra.mxu0 0.0
    %2195 = vmatprep.subr.mxu0 0.0
    %2196 = vmatpush1.msra.mxu0 0.0
    %2197 = vmatprep.subr.mxu0 0.0
    %2198 = vmatpush1.msra.mxu0 0.0
    %2199 = vmatprep.subr.mxu0 0.0
    %2200 = vmatpush1.msra.mxu0 0.0
    %2201 = vmatprep.subr.mxu0 0.0
    %2202 = vmatpush1.msra.mxu0 0.0
    %2203 = vmatprep.subr.mxu0 0.0
    %2204 = vmatpush1.msra.mxu0 0.0
    %2205 = vmatprep.subr.mxu0 0.0
    %2206 = vmatpush1.msra.mxu0 0.0
    %2207 = vmatprep.subr.mxu0 0.0
    %2208 = vmatpush1.msra.mxu0 0.0
    %2209 = vmatprep.subr.mxu0 0.0
    %2210 = vmatpush1.msra.mxu0 0.0
    %2211 = vmatprep.subr.mxu0 0.0
    %2212 = vmatpush1.msra.mxu0 0.0
    %2213 = vmatprep.subr.mxu0 0.0
    %2214 = vmatpush1.msra.mxu0 0.0
    %2215 = vmatprep.subr.mxu0 0.0
    %2216 = vmatpush1.msra.mxu0 0.0
    %2217 = vmatprep.subr.mxu0 0.0
    %2218 = vmatpush1.msra.mxu0 0.0
    %2219 = vmatprep.subr.mxu0 0.0
    %2220 = vmatpush1.msra.mxu0 0.0
    %2221 = vmatprep.subr.mxu0 0.0
    %2222 = vmatpush1.msra.mxu0 0.0
    %2223 = vmatprep.subr.mxu0 0.0
    %2224 = vmatpush1.msra.mxu0 0.0
    %2225 = vmatprep.subr.mxu0 0.0
    %2226 = vmatpush1.msra.mxu0 0.0
    %2227 = vmatprep.subr.mxu0 0.0
    %2228 = vmatpush1.msra.mxu0 0.0
    %2229 = vmatprep.subr.mxu0 0.0
    %2230 = vmatpush1.msra.mxu0 0.0
    %2231 = vmatprep.subr.mxu0 0.0
    %2232 = vmatpush1.msra.mxu0 0.0
    %2233 = vmatprep.subr.mxu0 0.0
    %2234 = vmatpush1.msra.mxu0 0.0
    %2235 = vmatprep.subr.mxu0 0.0
    %2236 = vmatpush1.msra.mxu0 0.0
    %2237 = vmatprep.subr.mxu0 0.0
    %2238 = vmatpush1.msra.mxu0 0.0
    %2239 = vmatprep.subr.mxu0 0.0
    %2240 = vmatpush1.msra.mxu0 0.0
    %2241 = vmatprep.subr.mxu0 0.0
    %2242 = vmatpush1.msra.mxu0 0.0
    %2243 = vmatprep.subr.mxu0 0.0
    %2244 = vmatpush1.msra.mxu0 0.0
    %2245 = vmatprep.subr.mxu0 0.0
    %2246 = vmatpush1.msra.mxu0 0.0
    %2247 = vmatprep.mubr.f32.mxu0 0.0
    %2248 = vmatmul.mubr.f32.gmra.mrb[0].mxu0 %v2181
    %v2249 = vpop.f32.mrb[0].mxu0
    %v2250 = vadd.f32 0.0, %v2249
    %v2251 = vpop.f32.mrb[0].mxu0
    %2252 = vdwg.mxu0
    %v2254 = vrot.slane %v2250, 4
    %v2256 = vadd.f32 %v1351, %v2254
    %v2257 = vxor.u32 %v2256, 2147483648
    %v2258 = vmul.f32 %v2257, 1.442695
    %v2259 = vpow.pop %v2258
    %v2260 = vadd.f32 %v2259, 1.0
    %v2261 = vrcp.pop %v2260
    %v2262 = vmul.f32 1.0, %v2261
    %v2263 = vtanh.pop %v2256
    %v2265 = vrot.slane %v2179, 4
    %2266 = vrot.lane.b32.xlu0 %v2265, 32
    %v2267 = vpop.permute.xlu0 %2266
    %v2269 = vmul.f32 %v2262, %v2267
    %2271 = vrot.lane.b32.xlu0 %v2263, 32
    %v2272 = vpop.permute.xlu0 %2271
    %v2274 = vmul.f32 %v2262, %v2272
    %2276 = vrot.lane.b32.xlu0 %v2274, 32
    %v2277 = vpop.permute.xlu0 %2276
    %v2279 = vadd.f32 %v2269, %v2277
    %v2280 = vtanh.pop %v2279
    %2282 = vrot.lane.b32.xlu0 %v2280, 32
    %v2283 = vpop.permute.xlu0 %2282
    %v2285 = vmul.f32 %v2262, %v2283
    %vm2286 = vcmp.gt.s32.totalorder %v1354, 6
    %v2287 = vsel %vm2286, 1, 0
    %v2288 = vcvt.s32.f32 %v2287
    %2290 = vset.pattern.permute.xlu0 0
    %2291 = vperm.xlu0 %2290, %v2288
    %v2292 = vpop.permute.xlu0 %2291
    %v2295 = vrot.slane %v2285, 4
    %2296 = vrot.lane.b32.xlu0 %v2295, 64
    %v2297 = vpop.permute.xlu0 %2296
    %v2299 = vmul.f32 %v2292, %v2297
    %v2300 = vsub.f32 1.0, %v2288
    %2302 = vset.pattern.permute.xlu0 0
    %2303 = vperm.xlu0 %2302, %v2300
    %v2304 = vpop.permute.xlu0 %2303
    %v2306 = vmul.f32 %v2304, %v2167
    %v2307 = vadd.f32 %v2299, %v2306
    %v2309 = vrot.slane %v2279, 4
    %2310 = vrot.lane.b32.xlu0 %v2309, 96
    %v2311 = vpop.permute.xlu0 %2310
    %v2313 = vmul.f32 %v2292, %v2311
    %v2314 = vmul.f32 %v2304, %v2179
    %v2315 = vadd.f32 %v2313, %v2314
    %v2317 = vsel %vm1359, %v2307, 0
    %2319 = vmatprep.subr.mxu0 0.0
    %2320 = vmatpush1.msra.mxu0 %v1355
    %2321 = vmatprep.subr.mxu0 0.0
    %2322 = vmatpush1.msra.mxu0 %v1356
    %2323 = vmatprep.subr.mxu0 0.0
    %2324 = vmatpush1.msra.mxu0 %v1357
    %2325 = vmatprep.subr.mxu0 0.0
    %2326 = vmatpush1.msra.mxu0 %v1358
    %2327 = vmatprep.subr.mxu0 0.0
    %2328 = vmatpush1.msra.mxu0 0.0
    %2329 = vmatprep.subr.mxu0 0.0
    %2330 = vmatpush1.msra.mxu0 0.0
    %2331 = vmatprep.subr.mxu0 0.0
    %2332 = vmatpush1.msra.mxu0 0.0
    %2333 = vmatprep.subr.mxu0 0.0
    %2334 = vmatpush1.msra.mxu0 0.0
    %2335 = vmatprep.subr.mxu0 0.0
    %2336 = vmatpush1.msra.mxu0 0.0
    %2337 = vmatprep.subr.mxu0 0.0
    %2338 = vmatpush1.msra.mxu0 0.0
    %2339 = vmatprep.subr.mxu0 0.0
    %2340 = vmatpush1.msra.mxu0 0.0
    %2341 = vmatprep.subr.mxu0 0.0
    %2342 = vmatpush1.msra.mxu0 0.0
    %2343 = vmatprep.subr.mxu0 0.0
    %2344 = vmatpush1.msra.mxu0 0.0
    %2345 = vmatprep.subr.mxu0 0.0
    %2346 = vmatpush1.msra.mxu0 0.0
    %2347 = vmatprep.subr.mxu0 0.0
    %2348 = vmatpush1.msra.mxu0 0.0
    %2349 = vmatprep.subr.mxu0 0.0
    %2350 = vmatpush1.msra.mxu0 0.0
    %2351 = vmatprep.subr.mxu0 0.0
    %2352 = vmatpush1.msra.mxu0 0.0
    %2353 = vmatprep.subr.mxu0 0.0
    %2354 = vmatpush1.msra.mxu0 0.0
    %2355 = vmatprep.subr.mxu0 0.0
    %2356 = vmatpush1.msra.mxu0 0.0
    %2357 = vmatprep.subr.mxu0 0.0
    %2358 = vmatpush1.msra.mxu0 0.0
    %2359 = vmatprep.subr.mxu0 0.0
    %2360 = vmatpush1.msra.mxu0 0.0
    %2361 = vmatprep.subr.mxu0 0.0
    %2362 = vmatpush1.msra.mxu0 0.0
    %2363 = vmatprep.subr.mxu0 0.0
    %2364 = vmatpush1.msra.mxu0 0.0
    %2365 = vmatprep.subr.mxu0 0.0
    %2366 = vmatpush1.msra.mxu0 0.0
    %2367 = vmatprep.subr.mxu0 0.0
    %2368 = vmatpush1.msra.mxu0 0.0
    %2369 = vmatprep.subr.mxu0 0.0
    %2370 = vmatpush1.msra.mxu0 0.0
    %2371 = vmatprep.subr.mxu0 0.0
    %2372 = vmatpush1.msra.mxu0 0.0
    %2373 = vmatprep.subr.mxu0 0.0
    %2374 = vmatpush1.msra.mxu0 0.0
    %2375 = vmatprep.subr.mxu0 0.0
    %2376 = vmatpush1.msra.mxu0 0.0
    %2377 = vmatprep.subr.mxu0 0.0
    %2378 = vmatpush1.msra.mxu0 0.0
    %2379 = vmatprep.subr.mxu0 0.0
    %2380 = vmatpush1.msra.mxu0 0.0
    %2381 = vmatprep.subr.mxu0 0.0
    %2382 = vmatpush1.msra.mxu0 0.0
    %2383 = vmatprep.mubr.f32.mxu0 0.0
    %2384 = vmatmul.mubr.f32.gmra.mrb[0].mxu0 %v2317
    %v2385 = vpop.f32.mrb[0].mxu0
    %v2386 = vadd.f32 0.0, %v2385
    %v2387 = vpop.f32.mrb[0].mxu0
    %2388 = vdwg.mxu0
    %v2390 = vrot.slane %v2386, 2
    %v2392 = vadd.f32 %v1351, %v2390
    %v2393 = vxor.u32 %v2392, 2147483648
    %v2394 = vmul.f32 %v2393, 1.442695
    %v2395 = vpow.pop %v2394
    %v2396 = vadd.f32 %v2395, 1.0
    %v2397 = vrcp.pop %v2396
    %v2398 = vmul.f32 1.0, %v2397
    %v2399 = vtanh.pop %v2392
    %v2401 = vrot.slane %v2315, 2
    %2402 = vrot.lane.b32.xlu0 %v2401, 32
    %v2403 = vpop.permute.xlu0 %2402
    %v2405 = vmul.f32 %v2398, %v2403
    %2407 = vrot.lane.b32.xlu0 %v2399, 32
    %v2408 = vpop.permute.xlu0 %2407
    %v2410 = vmul.f32 %v2398, %v2408
    %2412 = vrot.lane.b32.xlu0 %v2410, 32
    %v2413 = vpop.permute.xlu0 %2412
    %v2415 = vadd.f32 %v2405, %v2413
    %v2416 = vtanh.pop %v2415
    %2418 = vrot.lane.b32.xlu0 %v2416, 32
    %v2419 = vpop.permute.xlu0 %2418
    %v2421 = vmul.f32 %v2398, %v2419
    %vm2422 = vcmp.gt.s32.totalorder %v1354, 7
    %v2423 = vsel %vm2422, 1, 0
    %v2424 = vcvt.s32.f32 %v2423
    %2426 = vset.pattern.permute.xlu0 0
    %2427 = vperm.xlu0 %2426, %v2424
    %v2428 = vpop.permute.xlu0 %2427
    %v2431 = vrot.slane %v2421, 6
    %2432 = vrot.lane.b32.xlu0 %v2431, 64
    %v2433 = vpop.permute.xlu0 %2432
    %v2435 = vmul.f32 %v2428, %v2433
    %v2436 = vsub.f32 1.0, %v2424
    %2438 = vset.pattern.permute.xlu0 0
    %2439 = vperm.xlu0 %2438, %v2436
    %v2440 = vpop.permute.xlu0 %2439
    %v2442 = vmul.f32 %v2440, %v2307
    %v2443 = vadd.f32 %v2435, %v2442
    %v2445 = vrot.slane %v2415, 6
    %2446 = vrot.lane.b32.xlu0 %v2445, 96
    %v2447 = vpop.permute.xlu0 %2446
    %v2449 = vmul.f32 %v2428, %v2447
    %v2450 = vmul.f32 %v2440, %v2315
    %v2451 = vadd.f32 %v2449, %v2450
    %2453 = vrot.lane.b32.xlu0 %v1470, 64
    %v2454 = vpop.permute.xlu0 %2453
    %2457 = vrot.lane.b32.xlu0 %v1609, 32
    %v2458 = vpop.permute.xlu0 %2457
    %2461 = vrot.lane.b32.xlu0 %v1753, 64
    %v2462 = vpop.permute.xlu0 %2461
    %2465 = vrot.lane.b32.xlu0 %v1889, 96
    %v2466 = vpop.permute.xlu0 %2465
    %2469 = vrot.lane.b32.xlu0 %v2016, 64
    %v2470 = vpop.permute.xlu0 %2469
    %2473 = vrot.lane.b32.xlu0 %v2155, 32
    %v2474 = vpop.permute.xlu0 %2473
    %2477 = vrot.lane.b32.xlu0 %v2299, 64
    %v2478 = vpop.permute.xlu0 %2477
    %2481 = vrot.lane.b32.xlu0 %v2435, 96
    %v2482 = vpop.permute.xlu0 %2481
    %v2484 = vsel %vm1359, %v2454, %v2458
    %v2485 = vsel %vm752, %v2484, %v2462
    %vm2486 = vcmask 785408
    %v2487 = vsel %vm2486, %v2485, %v2466
    %v2488 = vsel %vm1359, %v2470, %v2474
    %v2489 = vsel %vm752, %v2488, %v2478
    %v2490 = vsel %vm2486, %v2489, %v2482
    %v2493 = vcombine.low %v2487, %v2490
    %v2495 = vunpack.c.l.s4 1983009808
    %v2496 = vunpack.c.0.s8 %v2495
    %v2497 = vlaneseq
    %v2498 = vshrl.u32 %v2497, 7
    %v2499 = vsub.s32 %v2496, %v2498
    %v2500 = vrot.slane %v2493, %v2499
    %2502 = vst [vmem:[%s11] sm:$0xf] %v2500
    %vm2503 = vcmask 254976
    %2504 = vst.msk [vmem:[#allocation2] sm:$0x3] %vm2503, %v2443
    %2505 = vst.msk [vmem:[#allocation4] sm:$0x3] %vm2503, %v2451
    // Predicated region
    $region46: #{full_model_body_motion_forward.1} parent=1 // pred_check
      _
    $region47: #{full_model_body_motion_forward.1} parent=1 // pred_check_branch
      %2507 = sbr.rel (0) target = $region49
    $region48: #{full_model_body_motion_forward.1} parent=1 // pred_region
      _
    $region49: #{full_model_body_motion_forward.1} parent=1 // pred_fallthru
      _
    // Predicated region
    $region50: #{full_model_body_motion_forward.1} parent=1 // pred_check
      _
    $region51: #{full_model_body_motion_forward.1} parent=1 // pred_check_branch
      %2509 = sbr.rel (0) target = $region53
    $region52: #{full_model_body_motion_forward.1} parent=1 // pred_region
      %s2511 = ssub.s32 32, 32
      %2512 = vsyncadd [#allocation3], %s2511
      %s2514 = sshll.u32 [#allocation2], 4
      %s2515 = int_to_ptr.vmem [resolvable:$true] %s2514
      %2517 = dma.vmem_to_hbm [thread:$0]  %s2515, 32, %s12, [#allocation3]
    $region53: #{full_model_body_motion_forward.1} parent=1 // pred_fallthru
      _
    // Predicated region
    $region54: #{full_model_body_motion_forward.1} parent=1 // pred_check
      _
    $region55: #{full_model_body_motion_forward.1} parent=1 // pred_check_branch
      %2519 = sbr.rel (0) target = $region57
    $region56: #{full_model_body_motion_forward.1} parent=1 // pred_region
      %s2521 = ssub.s32 32, 32
      %2522 = vsyncadd [#allocation5], %s2521
      %s2524 = sshll.u32 [#allocation4], 4
      %s2525 = int_to_ptr.vmem [resolvable:$true] %s2524
      %2527 = dma.vmem_to_hbm [thread:$0]  %s2525, 32, %s13, [#allocation5]
    $region57: #{full_model_body_motion_forward.1} parent=1 // pred_fallthru
      _
    // Predicated region
    $region58: #{full_model_body_motion_forward.1} parent=1 // pred_check
      _
    $region59: #{full_model_body_motion_forward.1} parent=1 // pred_check_branch
      %2529 = sbr.rel (0) target = $region61
    $region60: #{full_model_body_motion_forward.1} parent=1 // pred_region
      _
    $region61: #{full_model_body_motion_forward.1} parent=1 // pred_fallthru
      _
    // Predicated region
    $region62: #{full_model_body_motion_forward.1} parent=1 // pred_check
      _
    $region63: #{full_model_body_motion_forward.1} parent=1 // pred_check_branch
      %2531 = sbr.rel (0) target = $region65
    $region64: #{full_model_body_motion_forward.1} parent=1 // pred_region
      %2532 = dma.done [#allocation3], 32
    $region65: #{full_model_body_motion_forward.1} parent=1 // pred_fallthru
      _
    // Predicated region
    $region66: #{full_model_body_motion_forward.1} parent=1 // pred_check
      _
    $region67: #{full_model_body_motion_forward.1} parent=1 // pred_check_branch
      %2534 = sbr.rel (0) target = $region69
    $region68: #{full_model_body_motion_forward.1} parent=1 // pred_region
      %2535 = dma.done [#allocation5], 32
    $region69: #{full_model_body_motion_forward.1} parent=1 // pred_fallthru
      _
    %2536 = vsyncpa [#allocation3], 1
    %2537 = vsyncpa [#allocation5], 1

</llo_original>
